<compile_context>
chip_gen: v5e
topology: v5e:2x2
jax: 0.10.0
libtpu: 0.0.40
codegen_flags: <defaults>
</compile_context>

<pallas_src>
import functools

import jax
import jax.numpy as jnp
from jax.experimental import pallas as pl
from jax.experimental.pallas import tpu as pltpu


# -----------------------------------------------------------------------------
# Hardware / feature detection helpers
# -----------------------------------------------------------------------------
def _tpu_vmem_bytes():
    """Per-core VMEM capacity (generation aware), with a safe fallback."""
    try:
        return int(pltpu.get_tpu_info().vmem_capacity_bytes)
    except Exception:
        try:
            kind = jax.devices()[0].device_kind.lower()
        except Exception:
            kind = ""
        if "v7" in kind or "7x" in kind:
            return 64 << 20
        return 128 << 20


def _bf16_logits_ok():
    """bf16 VPU/EUP exists on v6e/v7x; keep f32 elementwise elsewhere (v5e)."""
    try:
        kind = jax.devices()[0].device_kind.lower()
    except Exception:
        return False
    return ("v6" in kind) or ("v7" in kind) or ("7x" in kind)


_SINGLE_BUFFER_OK = None


def _probe_kernel(x_ref, o_ref):
    o_ref[...] = x_ref[...] + 1.0


def _single_buffer_supported():
    """Probe pipeline_mode=pl.Buffered(1) with a tiny kernel; cache the result."""
    global _SINGLE_BUFFER_OK
    if _SINGLE_BUFFER_OK is None:
        try:
            spec = pl.BlockSpec((8, 128), lambda i: (0, 0),
                                pipeline_mode=pl.Buffered(1))
            out = pl.pallas_call(
                _probe_kernel,
                out_shape=jax.ShapeDtypeStruct((16, 128), jnp.float32),
                grid=(2,),
                in_specs=[spec],
                out_specs=pl.BlockSpec((8, 128), lambda i: (i, 0)),
            )(jnp.zeros((8, 128), jnp.float32))
            jax.block_until_ready(out)
            _SINGLE_BUFFER_OK = True
        except Exception:
            _SINGLE_BUFFER_OK = False
    return _SINGLE_BUFFER_OK


def _const_block_spec(shape):
    """BlockSpec for a grid-invariant input; single-buffered when supported."""
    index_map = lambda i: (0,) * len(shape)
    if _single_buffer_supported():
        return pl.BlockSpec(shape, index_map, pipeline_mode=pl.Buffered(1))
    return pl.BlockSpec(shape, index_map)


# -----------------------------------------------------------------------------
# GAT kernel: one row-tile of queries per grid step, all heads in-body.
# -----------------------------------------------------------------------------
def _gat_kernel(adj_ref, esrc_ref, edst_ref, wh_ref, out_ref, *,
                num_heads, hidden, compute_dtype):
    zero = jnp.asarray(0.0, compute_dtype)
    neg = jnp.asarray(-1e9, compute_dtype)
    slope = jnp.asarray(0.2, compute_dtype)

    # Additive mask computed in-kernel from the raw int8 adjacency row tile.
    mask = adj_ref[...].astype(jnp.float32) > 0.0                # (tm, N)
    bias = jnp.where(mask, zero, neg)                            # (tm, N)

    e_src = esrc_ref[...].astype(compute_dtype)                  # (tm, Hd)
    e_dst = edst_ref[...].astype(compute_dtype)                  # (Hd, N)

    haug = hidden + 1
    outs = []
    for h in range(num_heads):                                   # static, small
        e = e_src[:, h:h + 1] + e_dst[h:h + 1, :]                # (tm, N)
        e = jnp.where(e > zero, e, slope * e)                    # LeakyReLU(0.2)
        e = e + bias                                             # fold mask
        m = jnp.max(e, axis=-1, keepdims=True)
        p = jnp.exp(e - m).astype(jnp.bfloat16)                  # (tm, N) MXU lhs

        # Per-head bf16 Wh slice; last column is all-ones -> denom via MXU.
        rhs = wh_ref[:, h * haug:(h + 1) * haug]                 # (N, hidden+1)
        res = jnp.dot(p, rhs, preferred_element_type=jnp.float32)  # (tm, hidden+1)
        acc = res[:, :hidden]
        denom = res[:, hidden:hidden + 1]

        acc = acc * pl.reciprocal(denom, approx=True)            # deferred softmax
        acc = jnp.where(acc > 0,
                        acc,
                        jnp.exp(jnp.minimum(acc, 0.0)) - 1.0)    # ELU
        outs.append(acc)

    # Single lane-dense store of the concatenated heads.
    out_ref[...] = jnp.concatenate(outs, axis=-1).astype(out_ref.dtype)


def _graph_attention_vmem(tm, n_tot, num_heads, hidden, logit_bytes):
    """Rough per-step VMEM working-set estimate (bytes)."""
    d_out = num_heads * hidden
    d_aug = num_heads * (hidden + 1)
    adj = 2 * tm * n_tot                     # int8 row tile, double-buffered
    outp = 2 * tm * d_out * 4                # f32 output tile, double-buffered
    esrc = 2 * tm * num_heads * 4
    const = n_tot * d_aug * 2 + num_heads * n_tot * 4   # resident Wh(bf16) + e_dst
    temps = 4 * tm * n_tot * logit_bytes     # bias/e/p live temporaries
    return adj + outp + esrc + const + temps + (2 << 20)


def graph_attention(adj_i8, e_src, e_dst, wh_aug, *, num_heads, hidden,
                    row_tile=None):
    """adj_i8 (N,N) int8 {0,1}; e_src (N,Hd) f32; e_dst (Hd,N) f32;
    wh_aug (N, Hd*(hidden+1)) bf16 with a trailing ones column per head."""
    n = adj_i8.shape[0]
    d_out = num_heads * hidden
    d_aug = num_heads * (hidden + 1)
    assert wh_aug.shape == (n, d_aug)

    capacity = _tpu_vmem_bytes()
    compute_dtype = jnp.bfloat16 if _bf16_logits_ok() else jnp.float32
    logit_bytes = 2 if compute_dtype == jnp.bfloat16 else 4
    budget = int(capacity * 0.6)

    # Choose the row tile (multiples of 32 for the int8 adjacency sublane tile).
    if row_tile is not None:
        tm = int(row_tile)
        assert tm % 32 == 0 or tm == n, "row_tile must be a multiple of 32"
        n_pad = ((n + tm - 1) // tm) * tm
    elif n <= 512 and _graph_attention_vmem(n, n, num_heads, hidden,
                                            logit_bytes) <= budget:
        tm, n_pad = n, n                      # single full block, no padding
    else:
        n_pad = ((n + 127) // 128) * 128
        tm = 32
        for cand in (1024, 512, 256, 128, 64):
            if n_pad % cand == 0 and _graph_attention_vmem(
                    cand, n_pad, num_heads, hidden, logit_bytes) <= budget:
                tm = cand
                break

    # Pad to a whole number of tiles (padded keys masked out; rows sliced off).
    if n_pad != n:
        pad = n_pad - n
        adj_i8 = jnp.pad(adj_i8, ((0, pad), (0, pad)))
        e_src = jnp.pad(e_src, ((0, pad), (0, 0)))
        e_dst = jnp.pad(e_dst, ((0, 0), (0, pad)))
        wh_aug = jnp.pad(wh_aug, ((0, pad), (0, 0)))

    vmem_est = _graph_attention_vmem(tm, n_pad, num_heads, hidden, logit_bytes)
    vmem_limit = int(min(max(vmem_est + (4 << 20), 32 << 20),
                         int(capacity * 0.75)))

    kernel = functools.partial(_gat_kernel, num_heads=num_heads, hidden=hidden,
                               compute_dtype=compute_dtype)
    grid = (n_pad // tm,)

    out = pl.pallas_call(
        kernel,
        out_shape=jax.ShapeDtypeStruct((n_pad, d_out), jnp.float32),
        grid=grid,
        in_specs=[
            pl.BlockSpec((tm, n_pad), lambda i: (i, 0)),          # int8 adj rows
            pl.BlockSpec((tm, num_heads), lambda i: (i, 0)),      # e_src rows
            _const_block_spec((num_heads, n_pad)),                # e_dst (resident)
            _const_block_spec((n_pad, d_aug)),                    # Wh bf16 (resident)
        ],
        out_specs=pl.BlockSpec((tm, d_out), lambda i: (i, 0)),    # concat heads
        compiler_params=pltpu.CompilerParams(
            dimension_semantics=("parallel",),
            vmem_limit_bytes=vmem_limit,
        ),
    )(adj_i8, e_src, e_dst, wh_aug)

    return out[:n] if n_pad != n else out


# -----------------------------------------------------------------------------
# Encoder.forward equivalent
# -----------------------------------------------------------------------------
def encoder_forward(params, feat, adj, tree_partitions, anchor_index,
                    row_tile=None):
    num_heads, hidden = params["a_src"].shape
    n = feat.shape[0]

    # Projection for all heads in one matmul (bf16 operands, f32 accumulation).
    wh_all = jnp.dot(feat.astype(jnp.bfloat16), params["W"].astype(jnp.bfloat16),
                     preferred_element_type=jnp.float32)            # (N, Hd*H)
    wh3 = wh_all.reshape(n, num_heads, hidden)

    # Per-node attention terms, tiny matmuls, lane-dense layouts for the kernel.
    e_src = jnp.einsum("nhd,hd->nh", wh3, params["a_src"])          # (N, Hd)
    e_dst = jnp.einsum("nhd,hd->hn", wh3, params["a_dst"])          # (Hd, N)

    # Augmented bf16 Wh: ones column per head so the softmax denominator falls
    # out of the existing p @ Wh matmul on the MXU.
    ones = jnp.ones((n, num_heads, 1), wh_all.dtype)
    wh_aug = jnp.concatenate([wh3, ones], axis=-1).reshape(
        n, num_heads * (hidden + 1)).astype(jnp.bfloat16)

    # Adjacency as a raw int8 {0,1} stream (1 B/elem); mask is folded in-kernel.
    if adj.dtype == jnp.int8:
        adj_i8 = adj
    elif adj.dtype == jnp.bool_:
        adj_i8 = adj.astype(jnp.int8)
    else:
        adj_i8 = (adj != 0).astype(jnp.int8)

    heads = graph_attention(adj_i8, e_src, e_dst, wh_aug,
                            num_heads=num_heads, hidden=hidden,
                            row_tile=row_tile)

    # Tree encoder tail + anchor gather left to XLA (sub-vreg sizes; launching
    # a pallas_call here costs more than the math).
    anchor_feat = heads[anchor_index]                                # (A, D)
    counts = jnp.sum(tree_partitions, axis=-1, keepdims=True)        # (P, 1)
    pooled = jnp.dot(tree_partitions, anchor_feat,
                     preferred_element_type=jnp.float32)
    pooled = pooled / jnp.maximum(counts, 1.0)                       # mean pool
    tree_embed = jnp.tanh(jnp.dot(pooled, params["W_t"]) + params["b_t"])
    return tree_embed, heads


def make_params(key, num_feature, num_hidden, num_heads):
    d = num_heads * num_hidden
    k1, k2, k3, k4, k5 = jax.random.split(key, 5)
    return {
        # Per-head projection matrices stored concatenated column-wise: (F, Hd*H).
        "W": 0.1 * jax.random.normal(k1, (num_feature, d), jnp.float32),
        "a_src": 0.1 * jax.random.normal(k2, (num_heads, num_hidden), jnp.float32),
        "a_dst": 0.1 * jax.random.normal(k3, (num_heads, num_hidden), jnp.float32),
        "W_t": 0.1 * jax.random.normal(k4, (d, d), jnp.float32),
        "b_t": 0.1 * jax.random.normal(k5, (1, d), jnp.float32),
    }


# Pure-JAX f32 reference (exact softmax) for a sanity check.
def encoder_reference(params, feat, adj, tree_partitions, anchor_index):
    num_heads, hidden = params["a_src"].shape
    wh_all = feat @ params["W"]
    outs = []
    for h in range(num_heads):
        wh = wh_all[:, h * hidden:(h + 1) * hidden]
        e = (jnp.sum(wh * params["a_src"][h], -1, keepdims=True)
             + jnp.sum(wh * params["a_dst"][h], -1, keepdims=True).T)
        e = jnp.where(e > 0, e, 0.2 * e)
        e = jnp.where(adj > 0, e, -1e9)
        alpha = jax.nn.softmax(e, axis=-1)
        outs.append(jax.nn.elu(alpha @ wh))
    heads = jnp.concatenate(outs, axis=-1)
    anchor_feat = heads[anchor_index]
    counts = jnp.sum(tree_partitions, -1, keepdims=True)
    pooled = (tree_partitions @ anchor_feat) / jnp.maximum(counts, 1.0)
    tree_embed = jnp.tanh(pooled @ params["W_t"] + params["b_t"])
    return tree_embed, heads


if __name__ == "__main__":
    # Small deterministic shapes that still exercise row tiling (grid = 4).
    N, F_dim, H, num_heads = 256, 32, 16, 4   # nodes, features, hidden/head, heads
    A, P = 16, 4                              # anchors, tree partitions
    dropout, big = 0.1, False                 # no-ops at inference

    key = jax.random.PRNGKey(0)
    kf, ka, kp, kw = jax.random.split(key, 4)

    feat = jax.random.normal(kf, (N, F_dim), jnp.float32)
    adj = (jax.random.uniform(ka, (N, N)) < 0.05).astype(jnp.float32)
    adj = jnp.maximum(adj, jnp.eye(N, dtype=jnp.float32))             # self loops
    adj_i8 = adj.astype(jnp.int8)                                     # raw {0,1}

    anchor_index = jnp.arange(A, dtype=jnp.int32) * (N // A)          # anchor nodes
    tree_partitions = (jax.random.uniform(kp, (P, A)) < 0.5).astype(jnp.float32)
    tree_partitions = tree_partitions.at[:, 0].set(1.0)               # no empty part.

    params = make_params(kw, F_dim, H, num_heads)

    fwd = jax.jit(encoder_forward, static_argnames=("row_tile",))
    tree_embed, heads = fwd(params, feat, adj_i8, tree_partitions, anchor_index,
                            row_tile=64)
    jax.block_until_ready((tree_embed, heads))

    assert tree_embed.shape == (P, num_heads * H)
    assert heads.shape == (N, num_heads * H)

    # Loose-tolerance check vs f32 reference (bf16 matmuls + approx reciprocal).
    tree_ref, heads_ref = encoder_reference(
        params, feat, adj, tree_partitions, anchor_index)
    assert bool(jnp.all(jnp.isfinite(heads)))
    assert bool(jnp.all(jnp.isfinite(tree_embed)))
    assert bool(jnp.allclose(heads, heads_ref, atol=1e-1, rtol=1e-1))
    assert bool(jnp.allclose(tree_embed, tree_ref, atol=1e-1, rtol=1e-1))

    print("KERNEL_OK")
</pallas_src>

<mosaic_0001>
module attributes {stable_mosaic.version = 11 : i64} {
  func.func @_gat_kernel(%arg0: i32, %arg1: memref<64x256xi8, #tpu.memory_space<vmem>>, %arg2: memref<64x4xf32, #tpu.memory_space<vmem>>, %arg3: memref<4x256xf32, #tpu.memory_space<vmem>>, %arg4: memref<256x68xbf16, #tpu.memory_space<vmem>>, %arg5: memref<64x64xf32, #tpu.memory_space<vmem>>) attributes {dimension_semantics = [#tpu.dimension_semantics<parallel>], iteration_bounds = array<i64: 4>, scalar_prefetch = 0 : i64, scratch_operands = 0 : i64, tpu.core_type = #tpu.core_type<tc>, window_params = [{transform_indices = @transform_0, window_bounds = array<i64: 64, 256>}, {transform_indices = @transform_1, window_bounds = array<i64: 64, 4>}, {pipeline_mode = #tpu.pipeline_mode<synchronous>, transform_indices = @transform_2, window_bounds = array<i64: 4, 256>}, {pipeline_mode = #tpu.pipeline_mode<synchronous>, transform_indices = @transform_3, window_bounds = array<i64: 256, 68>}, {transform_indices = @transform_4, window_bounds = array<i64: 64, 64>}]} {
    %c0 = arith.constant 0 : index
    %c0_0 = arith.constant 0 : index
    %0 = vector.load %arg1[%c0, %c0_0] : memref<64x256xi8, #tpu.memory_space<vmem>>, vector<64x256xi8>
    %1 = arith.sitofp %0 : vector<64x256xi8> to vector<64x256xf32>
    %cst = arith.constant 0.000000e+00 : f32
    %2 = vector.broadcast %cst : f32 to vector<64x256xf32>
    %3 = arith.cmpf ogt, %1, %2 : vector<64x256xf32>
    %cst_1 = arith.constant 0.000000e+00 : f32
    %cst_2 = arith.constant -1.000000e+09 : f32
    %4 = vector.broadcast %cst_1 : f32 to vector<64x256xf32>
    %5 = vector.broadcast %cst_2 : f32 to vector<64x256xf32>
    %6 = arith.select %3, %4, %5 : vector<64x256xi1>, vector<64x256xf32>
    %c0_3 = arith.constant 0 : index
    %c0_4 = arith.constant 0 : index
    %7 = vector.load %arg2[%c0_3, %c0_4] : memref<64x4xf32, #tpu.memory_space<vmem>>, vector<64x4xf32>
    %c0_5 = arith.constant 0 : index
    %c0_6 = arith.constant 0 : index
    %8 = vector.load %arg3[%c0_5, %c0_6] : memref<4x256xf32, #tpu.memory_space<vmem>>, vector<4x256xf32>
    %9 = vector.extract_strided_slice %7 {offsets = [0, 0], sizes = [64, 1], strides = [1, 1]} : vector<64x4xf32> to vector<64x1xf32>
    %10 = vector.extract_strided_slice %8 {offsets = [0, 0], sizes = [1, 256], strides = [1, 1]} : vector<4x256xf32> to vector<1x256xf32>
    %11 = vector.broadcast %9 : vector<64x1xf32> to vector<64x256xf32>
    %12 = vector.broadcast %10 : vector<1x256xf32> to vector<64x256xf32>
    %13 = arith.addf %11, %12 : vector<64x256xf32>
    %cst_7 = arith.constant 0.000000e+00 : f32
    %14 = vector.broadcast %cst_7 : f32 to vector<64x256xf32>
    %15 = arith.cmpf ogt, %13, %14 : vector<64x256xf32>
    %cst_8 = arith.constant 2.000000e-01 : f32
    %16 = vector.broadcast %cst_8 : f32 to vector<64x256xf32>
    %17 = arith.mulf %16, %13 : vector<64x256xf32>
    %18 = arith.select %15, %13, %17 : vector<64x256xi1>, vector<64x256xf32>
    %19 = arith.addf %18, %6 : vector<64x256xf32>
    %cst_9 = arith.constant dense<0xFF800000> : vector<64xf32>
    %20 = vector.multi_reduction <maximumf>, %19, %cst_9 [1] : vector<64x256xf32> to vector<64xf32>
    %21 = vector.shape_cast %20 : vector<64xf32> to vector<64x1xf32>
    %22 = vector.broadcast %21 : vector<64x1xf32> to vector<64x256xf32>
    %23 = arith.subf %19, %22 : vector<64x256xf32>
    %24 = math.exp %23 : vector<64x256xf32>
    %25 = arith.truncf %24 : vector<64x256xf32> to vector<64x256xbf16>
    %c0_10 = arith.constant 0 : index
    %c0_11 = arith.constant 0 : index
    %26 = vector.load %arg4[%c0_10, %c0_11] : memref<256x68xbf16, #tpu.memory_space<vmem>>, vector<256x17xbf16>
    %cst_12 = arith.constant dense<0.000000e+00> : vector<64x17xf32>
    %27 = tpu.matmul %25, %26, %cst_12 {dimension_numbers = #tpu.dot_dimension_numbers<[1], [0], [0], [1], [0, 0, 1, 1], [], []>} : vector<64x256xbf16>, vector<256x17xbf16>, vector<64x17xf32> -> vector<64x17xf32>
    %28 = vector.extract_strided_slice %27 {offsets = [0, 0], sizes = [64, 16], strides = [1, 1]} : vector<64x17xf32> to vector<64x16xf32>
    %29 = vector.extract_strided_slice %27 {offsets = [0, 16], sizes = [64, 1], strides = [1, 1]} : vector<64x17xf32> to vector<64x1xf32>
    %30 = tpu.reciprocal %29 {approx = true} : vector<64x1xf32> -> vector<64x1xf32>
    %31 = vector.broadcast %30 : vector<64x1xf32> to vector<64x16xf32>
    %32 = arith.mulf %28, %31 : vector<64x16xf32>
    %cst_13 = arith.constant 0.000000e+00 : f32
    %33 = vector.broadcast %cst_13 : f32 to vector<64x16xf32>
    %34 = arith.cmpf ogt, %32, %33 : vector<64x16xf32>
    %cst_14 = arith.constant 0.000000e+00 : f32
    %35 = vector.broadcast %cst_14 : f32 to vector<64x16xf32>
    %36 = arith.minimumf %32, %35 : vector<64x16xf32>
    %37 = math.exp %36 : vector<64x16xf32>
    %cst_15 = arith.constant 1.000000e+00 : f32
    %38 = vector.broadcast %cst_15 : f32 to vector<64x16xf32>
    %39 = arith.subf %37, %38 : vector<64x16xf32>
    %40 = arith.select %34, %32, %39 : vector<64x16xi1>, vector<64x16xf32>
    %41 = vector.extract_strided_slice %7 {offsets = [0, 1], sizes = [64, 1], strides = [1, 1]} : vector<64x4xf32> to vector<64x1xf32>
    %42 = vector.extract_strided_slice %8 {offsets = [1, 0], sizes = [1, 256], strides = [1, 1]} : vector<4x256xf32> to vector<1x256xf32>
    %43 = vector.broadcast %41 : vector<64x1xf32> to vector<64x256xf32>
    %44 = vector.broadcast %42 : vector<1x256xf32> to vector<64x256xf32>
    %45 = arith.addf %43, %44 : vector<64x256xf32>
    %cst_16 = arith.constant 0.000000e+00 : f32
    %46 = vector.broadcast %cst_16 : f32 to vector<64x256xf32>
    %47 = arith.cmpf ogt, %45, %46 : vector<64x256xf32>
    %cst_17 = arith.constant 2.000000e-01 : f32
    %48 = vector.broadcast %cst_17 : f32 to vector<64x256xf32>
    %49 = arith.mulf %48, %45 : vector<64x256xf32>
    %50 = arith.select %47, %45, %49 : vector<64x256xi1>, vector<64x256xf32>
    %51 = arith.addf %50, %6 : vector<64x256xf32>
    %cst_18 = arith.constant dense<0xFF800000> : vector<64xf32>
    %52 = vector.multi_reduction <maximumf>, %51, %cst_18 [1] : vector<64x256xf32> to vector<64xf32>
    %53 = vector.shape_cast %52 : vector<64xf32> to vector<64x1xf32>
    %54 = vector.broadcast %53 : vector<64x1xf32> to vector<64x256xf32>
    %55 = arith.subf %51, %54 : vector<64x256xf32>
    %56 = math.exp %55 : vector<64x256xf32>
    %57 = arith.truncf %56 : vector<64x256xf32> to vector<64x256xbf16>
    %c0_19 = arith.constant 0 : index
    %c17 = arith.constant 17 : index
    %58 = vector.load %arg4[%c0_19, %c17] : memref<256x68xbf16, #tpu.memory_space<vmem>>, vector<256x17xbf16>
    %cst_20 = arith.constant dense<0.000000e+00> : vector<64x17xf32>
    %59 = tpu.matmul %57, %58, %cst_20 {dimension_numbers = #tpu.dot_dimension_numbers<[1], [0], [0], [1], [0, 0, 1, 1], [], []>} : vector<64x256xbf16>, vector<256x17xbf16>, vector<64x17xf32> -> vector<64x17xf32>
    %60 = vector.extract_strided_slice %59 {offsets = [0, 0], sizes = [64, 16], strides = [1, 1]} : vector<64x17xf32> to vector<64x16xf32>
    %61 = vector.extract_strided_slice %59 {offsets = [0, 16], sizes = [64, 1], strides = [1, 1]} : vector<64x17xf32> to vector<64x1xf32>
    %62 = tpu.reciprocal %61 {approx = true} : vector<64x1xf32> -> vector<64x1xf32>
    %63 = vector.broadcast %62 : vector<64x1xf32> to vector<64x16xf32>
    %64 = arith.mulf %60, %63 : vector<64x16xf32>
    %cst_21 = arith.constant 0.000000e+00 : f32
    %65 = vector.broadcast %cst_21 : f32 to vector<64x16xf32>
    %66 = arith.cmpf ogt, %64, %65 : vector<64x16xf32>
    %cst_22 = arith.constant 0.000000e+00 : f32
    %67 = vector.broadcast %cst_22 : f32 to vector<64x16xf32>
    %68 = arith.minimumf %64, %67 : vector<64x16xf32>
    %69 = math.exp %68 : vector<64x16xf32>
    %cst_23 = arith.constant 1.000000e+00 : f32
    %70 = vector.broadcast %cst_23 : f32 to vector<64x16xf32>
    %71 = arith.subf %69, %70 : vector<64x16xf32>
    %72 = arith.select %66, %64, %71 : vector<64x16xi1>, vector<64x16xf32>
    %73 = vector.extract_strided_slice %7 {offsets = [0, 2], sizes = [64, 1], strides = [1, 1]} : vector<64x4xf32> to vector<64x1xf32>
    %74 = vector.extract_strided_slice %8 {offsets = [2, 0], sizes = [1, 256], strides = [1, 1]} : vector<4x256xf32> to vector<1x256xf32>
    %75 = vector.broadcast %73 : vector<64x1xf32> to vector<64x256xf32>
    %76 = vector.broadcast %74 : vector<1x256xf32> to vector<64x256xf32>
    %77 = arith.addf %75, %76 : vector<64x256xf32>
    %cst_24 = arith.constant 0.000000e+00 : f32
    %78 = vector.broadcast %cst_24 : f32 to vector<64x256xf32>
    %79 = arith.cmpf ogt, %77, %78 : vector<64x256xf32>
    %cst_25 = arith.constant 2.000000e-01 : f32
    %80 = vector.broadcast %cst_25 : f32 to vector<64x256xf32>
    %81 = arith.mulf %80, %77 : vector<64x256xf32>
    %82 = arith.select %79, %77, %81 : vector<64x256xi1>, vector<64x256xf32>
    %83 = arith.addf %82, %6 : vector<64x256xf32>
    %cst_26 = arith.constant dense<0xFF800000> : vector<64xf32>
    %84 = vector.multi_reduction <maximumf>, %83, %cst_26 [1] : vector<64x256xf32> to vector<64xf32>
    %85 = vector.shape_cast %84 : vector<64xf32> to vector<64x1xf32>
    %86 = vector.broadcast %85 : vector<64x1xf32> to vector<64x256xf32>
    %87 = arith.subf %83, %86 : vector<64x256xf32>
    %88 = math.exp %87 : vector<64x256xf32>
    %89 = arith.truncf %88 : vector<64x256xf32> to vector<64x256xbf16>
    %c0_27 = arith.constant 0 : index
    %c34 = arith.constant 34 : index
    %90 = vector.load %arg4[%c0_27, %c34] : memref<256x68xbf16, #tpu.memory_space<vmem>>, vector<256x17xbf16>
    %cst_28 = arith.constant dense<0.000000e+00> : vector<64x17xf32>
    %91 = tpu.matmul %89, %90, %cst_28 {dimension_numbers = #tpu.dot_dimension_numbers<[1], [0], [0], [1], [0, 0, 1, 1], [], []>} : vector<64x256xbf16>, vector<256x17xbf16>, vector<64x17xf32> -> vector<64x17xf32>
    %92 = vector.extract_strided_slice %91 {offsets = [0, 0], sizes = [64, 16], strides = [1, 1]} : vector<64x17xf32> to vector<64x16xf32>
    %93 = vector.extract_strided_slice %91 {offsets = [0, 16], sizes = [64, 1], strides = [1, 1]} : vector<64x17xf32> to vector<64x1xf32>
    %94 = tpu.reciprocal %93 {approx = true} : vector<64x1xf32> -> vector<64x1xf32>
    %95 = vector.broadcast %94 : vector<64x1xf32> to vector<64x16xf32>
    %96 = arith.mulf %92, %95 : vector<64x16xf32>
    %cst_29 = arith.constant 0.000000e+00 : f32
    %97 = vector.broadcast %cst_29 : f32 to vector<64x16xf32>
    %98 = arith.cmpf ogt, %96, %97 : vector<64x16xf32>
    %cst_30 = arith.constant 0.000000e+00 : f32
    %99 = vector.broadcast %cst_30 : f32 to vector<64x16xf32>
    %100 = arith.minimumf %96, %99 : vector<64x16xf32>
    %101 = math.exp %100 : vector<64x16xf32>
    %cst_31 = arith.constant 1.000000e+00 : f32
    %102 = vector.broadcast %cst_31 : f32 to vector<64x16xf32>
    %103 = arith.subf %101, %102 : vector<64x16xf32>
    %104 = arith.select %98, %96, %103 : vector<64x16xi1>, vector<64x16xf32>
    %105 = vector.extract_strided_slice %7 {offsets = [0, 3], sizes = [64, 1], strides = [1, 1]} : vector<64x4xf32> to vector<64x1xf32>
    %106 = vector.extract_strided_slice %8 {offsets = [3, 0], sizes = [1, 256], strides = [1, 1]} : vector<4x256xf32> to vector<1x256xf32>
    %107 = vector.broadcast %105 : vector<64x1xf32> to vector<64x256xf32>
    %108 = vector.broadcast %106 : vector<1x256xf32> to vector<64x256xf32>
    %109 = arith.addf %107, %108 : vector<64x256xf32>
    %cst_32 = arith.constant 0.000000e+00 : f32
    %110 = vector.broadcast %cst_32 : f32 to vector<64x256xf32>
    %111 = arith.cmpf ogt, %109, %110 : vector<64x256xf32>
    %cst_33 = arith.constant 2.000000e-01 : f32
    %112 = vector.broadcast %cst_33 : f32 to vector<64x256xf32>
    %113 = arith.mulf %112, %109 : vector<64x256xf32>
    %114 = arith.select %111, %109, %113 : vector<64x256xi1>, vector<64x256xf32>
    %115 = arith.addf %114, %6 : vector<64x256xf32>
    %cst_34 = arith.constant dense<0xFF800000> : vector<64xf32>
    %116 = vector.multi_reduction <maximumf>, %115, %cst_34 [1] : vector<64x256xf32> to vector<64xf32>
    %117 = vector.shape_cast %116 : vector<64xf32> to vector<64x1xf32>
    %118 = vector.broadcast %117 : vector<64x1xf32> to vector<64x256xf32>
    %119 = arith.subf %115, %118 : vector<64x256xf32>
    %120 = math.exp %119 : vector<64x256xf32>
    %121 = arith.truncf %120 : vector<64x256xf32> to vector<64x256xbf16>
    %c0_35 = arith.constant 0 : index
    %c51 = arith.constant 51 : index
    %122 = vector.load %arg4[%c0_35, %c51] : memref<256x68xbf16, #tpu.memory_space<vmem>>, vector<256x17xbf16>
    %cst_36 = arith.constant dense<0.000000e+00> : vector<64x17xf32>
    %123 = tpu.matmul %121, %122, %cst_36 {dimension_numbers = #tpu.dot_dimension_numbers<[1], [0], [0], [1], [0, 0, 1, 1], [], []>} : vector<64x256xbf16>, vector<256x17xbf16>, vector<64x17xf32> -> vector<64x17xf32>
    %124 = vector.extract_strided_slice %123 {offsets = [0, 0], sizes = [64, 16], strides = [1, 1]} : vector<64x17xf32> to vector<64x16xf32>
    %125 = vector.extract_strided_slice %123 {offsets = [0, 16], sizes = [64, 1], strides = [1, 1]} : vector<64x17xf32> to vector<64x1xf32>
    %126 = tpu.reciprocal %125 {approx = true} : vector<64x1xf32> -> vector<64x1xf32>
    %127 = vector.broadcast %126 : vector<64x1xf32> to vector<64x16xf32>
    %128 = arith.mulf %124, %127 : vector<64x16xf32>
    %cst_37 = arith.constant 0.000000e+00 : f32
    %129 = vector.broadcast %cst_37 : f32 to vector<64x16xf32>
    %130 = arith.cmpf ogt, %128, %129 : vector<64x16xf32>
    %cst_38 = arith.constant 0.000000e+00 : f32
    %131 = vector.broadcast %cst_38 : f32 to vector<64x16xf32>
    %132 = arith.minimumf %128, %131 : vector<64x16xf32>
    %133 = math.exp %132 : vector<64x16xf32>
    %cst_39 = arith.constant 1.000000e+00 : f32
    %134 = vector.broadcast %cst_39 : f32 to vector<64x16xf32>
    %135 = arith.subf %133, %134 : vector<64x16xf32>
    %136 = arith.select %130, %128, %135 : vector<64x16xi1>, vector<64x16xf32>
    %137 = tpu.concatenate %40, %72, %104, %136 in 1 : vector<64x16xf32>, vector<64x16xf32>, vector<64x16xf32>, vector<64x16xf32> -> vector<64x64xf32>
    %c0_40 = arith.constant 0 : index
    %c0_41 = arith.constant 0 : index
    %138 = vector.load %arg5[%c0_40, %c0_41] : memref<64x64xf32, #tpu.memory_space<vmem>>, vector<64x64xf32>
    tpu.vector_store %arg5[%c0_40, %c0_41], %137 {strides = array<i32>} : memref<64x64xf32, #tpu.memory_space<vmem>>, vector<64x64xf32>,
    return
  }
  func.func @transform_0(%arg0: i32) -> (i32, i32) {
    %c0_i32 = arith.constant 0 : i32
    %c0_i32_0 = arith.constant 0 : i32
    return %arg0, %c0_i32 : i32, i32
  }
  func.func @transform_1(%arg0: i32) -> (i32, i32) {
    %c0_i32 = arith.constant 0 : i32
    %c0_i32_0 = arith.constant 0 : i32
    return %arg0, %c0_i32 : i32, i32
  }
  func.func @transform_2(%arg0: i32) -> (i32, i32) {
    %c0_i32 = arith.constant 0 : i32
    %c0_i32_0 = arith.constant 0 : i32
    %c0_i32_1 = arith.constant 0 : i32
    return %c0_i32, %c0_i32_0 : i32, i32
  }
  func.func @transform_3(%arg0: i32) -> (i32, i32) {
    %c0_i32 = arith.constant 0 : i32
    %c0_i32_0 = arith.constant 0 : i32
    %c0_i32_1 = arith.constant 0 : i32
    return %c0_i32, %c0_i32_0 : i32, i32
  }
  func.func @transform_4(%arg0: i32) -> (i32, i32) {
    %c0_i32 = arith.constant 0 : i32
    %c0_i32_0 = arith.constant 0 : i32
    return %arg0, %c0_i32 : i32, i32
  }
}

</mosaic_0001>

<llo_original>
// kernel: encoder_forward.1
$region0: #{encoder_forward.1}
  #allocation0 [shape = 'u32[]', space=smem, size = 0x4, offset = 0x4, fixed_abs, tag = 'smem constant byte address 0x4 - core index']
  #allocation1 [shape = 'u32[72,128]{1,0:T(1,128)}', space=vmem, size = 0x9000, scoped, tag = 'internal scratch']
  %s0 = inlined_call_operand.vmem [shape: s8[256,256], index: 0, kind: input, shape index: {}]
  %s1 = inlined_call_operand.vmem [shape: f32[256,4], index: 1, kind: input, shape index: {}]
  %s2 = inlined_call_operand.vmem [shape: f32[4,256], index: 2, kind: input, shape index: {}]
  %s3 = inlined_call_operand.vmem [shape: bf16[256,68], index: 3, kind: input, shape index: {}]
  %s4 = inlined_call_operand.vmem [shape: f32[256,64], index: 4, kind: output, shape index: {}]
  %s5 = sld [smem:[#allocation0]]
  $region49: #{encoder_forward.1} parent=0
    _
  %s7 = ssub.s32 1, %s5
  %s8 = scalar_select 0, %s7, %s5
  loop: start=0, step=1, limit=6
  $region2: #{encoder_forward.1} parent=0 // loop_pre_header
    _
  $region3: #{encoder_forward.1} parent=0 // loop_header
    %s10 = sphi 0, %s14
    %p11 = scmp.ge.s32.totalorder %s10, 6
    %s20 = sphi 0, %s22
    %s23 = sphi 0, %s20
    %s24 = sphi 0, %s23
    %s40 = sphi 0, %s24
    %s46 = sphi 0, %s48
    %s49 = sphi 0, %s46
    %s50 = sphi 0, %s49
    %s66 = sphi 0, %s50
    %s70 = sphi 0, %s70
    %s72 = sphi 0, %s70
    %s73 = sphi 0, %s72
    %s87 = sphi 0, %s73
    %s91 = sphi 0, %s91
    %s93 = sphi 0, %s91
    %s94 = sphi 0, %s93
    %s108 = sphi 0, %s94
    %s114 = sphi 0, %s116
    %s117 = sphi 0, %s114
    %s118 = sphi 0, %s117
    %s134 = sphi 0, %s118
  $region4: #{encoder_forward.1} parent=0 // loop_header_branch
    %13 = sbr.rel (%p11) target = $region8
  $region5: #{encoder_forward.1} parent=0 // loop_body
    %s15 = ssub.s32 %s10, 1
    %s16 = ssub.s32 %s10, 2
    %s17 = sadd.s32 %s10, 1
    %s18 = ssub.s32 %s10, %s17
    %p19 = scmp.eq.s32.totalorder %s18, 0
    %s21 = sadd.s32 %s20, 1
    %s22 = scalar_select %p19, %s20, %s21
    %p25 = pneg %p19
    %p26 = scmp.eq.s32.totalorder %s10, 3
    %p27 = por %p25, %p26
    %p28 = scmp.ne.s32.totalorder %s20, %s23
    %p29 = scmp.eq.s32.totalorder %s10, 0
    %p30 = por %p28, %p29
    %p31 = scmp.ne.s32.totalorder %s20, %s23
    %p32 = scmp.eq.s32.totalorder %s15, 3
    %p33 = por %p31, %p32
    %p34 = scmp.ne.s32.totalorder %s23, %s24
    %p35 = scmp.eq.s32.totalorder %s15, 0
    %p36 = por %p34, %p35
    %p37 = scmp.ne.s32.totalorder %s23, %s24
    %p38 = scmp.eq.s32.totalorder %s16, 3
    %p39 = por %p37, %p38
    %p41 = scmp.ne.s32.totalorder %s24, %s40
    %p42 = scmp.eq.s32.totalorder %s16, 0
    %p43 = por %p41, %p42
    %s44 = ssub.s32 %s10, %s17
    %p45 = scmp.eq.s32.totalorder %s44, 0
    %s47 = sadd.s32 %s46, 1
    %s48 = scalar_select %p45, %s46, %s47
    %p51 = pneg %p45
    %p52 = scmp.eq.s32.totalorder %s10, 3
    %p53 = por %p51, %p52
    %p54 = scmp.ne.s32.totalorder %s46, %s49
    %p55 = scmp.eq.s32.totalorder %s10, 0
    %p56 = por %p54, %p55
    %p57 = scmp.ne.s32.totalorder %s46, %s49
    %p58 = scmp.eq.s32.totalorder %s15, 3
    %p59 = por %p57, %p58
    %p60 = scmp.ne.s32.totalorder %s49, %s50
    %p61 = scmp.eq.s32.totalorder %s15, 0
    %p62 = por %p60, %p61
    %p63 = scmp.ne.s32.totalorder %s49, %s50
    %p64 = scmp.eq.s32.totalorder %s16, 3
    %p65 = por %p63, %p64
    %p67 = scmp.ne.s32.totalorder %s50, %s66
    %p68 = scmp.eq.s32.totalorder %s16, 0
    %p69 = por %p67, %p68
    %s71 = sadd.s32 %s70, 1
    %p74 = scmp.eq.s32.totalorder %s10, 3
    %p75 = scmp.ne.s32.totalorder %s70, %s72
    %p76 = scmp.eq.s32.totalorder %s10, 0
    %p77 = por %p75, %p76
    %p78 = scmp.ne.s32.totalorder %s70, %s72
    %p79 = scmp.eq.s32.totalorder %s15, 3
    %p80 = por %p78, %p79
    %p81 = scmp.ne.s32.totalorder %s72, %s73
    %p82 = scmp.eq.s32.totalorder %s15, 0
    %p83 = por %p81, %p82
    %p84 = scmp.ne.s32.totalorder %s72, %s73
    %p85 = scmp.eq.s32.totalorder %s16, 3
    %p86 = por %p84, %p85
    %p88 = scmp.ne.s32.totalorder %s73, %s87
    %p89 = scmp.eq.s32.totalorder %s16, 0
    %p90 = por %p88, %p89
    %s92 = sadd.s32 %s91, 1
    %p95 = scmp.eq.s32.totalorder %s10, 3
    %p96 = scmp.ne.s32.totalorder %s91, %s93
    %p97 = scmp.eq.s32.totalorder %s10, 0
    %p98 = por %p96, %p97
    %p99 = scmp.ne.s32.totalorder %s91, %s93
    %p100 = scmp.eq.s32.totalorder %s15, 3
    %p101 = por %p99, %p100
    %p102 = scmp.ne.s32.totalorder %s93, %s94
    %p103 = scmp.eq.s32.totalorder %s15, 0
    %p104 = por %p102, %p103
    %p105 = scmp.ne.s32.totalorder %s93, %s94
    %p106 = scmp.eq.s32.totalorder %s16, 3
    %p107 = por %p105, %p106
    %p109 = scmp.ne.s32.totalorder %s94, %s108
    %p110 = scmp.eq.s32.totalorder %s16, 0
    %p111 = por %p109, %p110
    %s112 = ssub.s32 %s10, %s17
    %p113 = scmp.eq.s32.totalorder %s112, 0
    %s115 = sadd.s32 %s114, 1
    %s116 = scalar_select %p113, %s114, %s115
    %p119 = pneg %p113
    %p120 = scmp.eq.s32.totalorder %s10, 3
    %p121 = por %p119, %p120
    %p122 = scmp.ne.s32.totalorder %s114, %s117
    %p123 = scmp.eq.s32.totalorder %s10, 0
    %p124 = por %p122, %p123
    %p125 = scmp.ne.s32.totalorder %s114, %s117
    %p126 = scmp.eq.s32.totalorder %s15, 3
    %p127 = por %p125, %p126
    %p128 = scmp.ne.s32.totalorder %s117, %s118
    %p129 = scmp.eq.s32.totalorder %s15, 0
    %p130 = por %p128, %p129
    %p131 = scmp.ne.s32.totalorder %s117, %s118
    %p132 = scmp.eq.s32.totalorder %s16, 3
    %p133 = por %p131, %p132
    %p135 = scmp.ne.s32.totalorder %s118, %s134
    %p136 = scmp.eq.s32.totalorder %s16, 0
    %p137 = por %p135, %p136
    %p138 = scmp.le.s32.totalorder 1, %s10
    %p139 = scmp.lt.s32.totalorder %s10, 5
    %p140 = pnand %p138, %p139
    %p141 = pneg %p140
    // Predicated region
    $region9: #{encoder_forward.1} parent=5 // pred_check
      _
    $region10: #{encoder_forward.1} parent=5 // pred_check_branch
      %143 = sbr.rel (%p140) target = $region12
    $region11: #{encoder_forward.1} parent=5 // pred_region
      %s144 = ssub.s32 %s10, 1
      // Predicated region
      $region13: #{encoder_forward.1} parent=11 // pred_check
        %p145 = pneg %p83
      $region14: #{encoder_forward.1} parent=11 // pred_check_branch
        %147 = sbr.rel (%p145) target = $region16
      $region15: #{encoder_forward.1} parent=11 // pred_region
        _
      $region16: #{encoder_forward.1} parent=11 // pred_fallthru
        _
      // Predicated region
      $region17: #{encoder_forward.1} parent=11 // pred_check
        %p148 = pneg %p104
      $region18: #{encoder_forward.1} parent=11 // pred_check_branch
        %150 = sbr.rel (%p148) target = $region20
      $region19: #{encoder_forward.1} parent=11 // pred_region
        _
      $region20: #{encoder_forward.1} parent=11 // pred_fallthru
        _
    $region12: #{encoder_forward.1} parent=5 // pred_fallthru
      _
    %p151 = scmp.lt.s32.totalorder %s10, 4
    // Predicated region
    $region21: #{encoder_forward.1} parent=5 // pred_check
      %p152 = pneg %p151
    $region22: #{encoder_forward.1} parent=5 // pred_check_branch
      %154 = sbr.rel (%p152) target = $region24
    $region23: #{encoder_forward.1} parent=5 // pred_region
      // Predicated region
      $region25: #{encoder_forward.1} parent=23 // pred_check
        %p155 = pneg %p30
      $region26: #{encoder_forward.1} parent=23 // pred_check_branch
        %157 = sbr.rel (%p155) target = $region28
      $region27: #{encoder_forward.1} parent=23 // pred_region
        %s158 = smul.u32 2, %s10
        %p159 = scmp.lt.s32.totalorder %s158, 7
        %s160 = scalar_select %p159, %s158, 7
        %s161 = smul.addr %s160, 2
        %s162 = smul.addr %s161, 8
        %s163 = scalar_lea.vmem %s0, %s162
        %s164 = smul.u32 2, %s10
      $region28: #{encoder_forward.1} parent=23 // pred_fallthru
        _
      // Predicated region
      $region29: #{encoder_forward.1} parent=23 // pred_check
        %p165 = pneg %p56
      $region30: #{encoder_forward.1} parent=23 // pred_check_branch
        %167 = sbr.rel (%p165) target = $region32
      $region31: #{encoder_forward.1} parent=23 // pred_region
        %s168 = smul.u32 8, %s10
        %p169 = scmp.lt.s32.totalorder %s168, 31
        %s170 = scalar_select %p169, %s168, 31
        %s171 = smul.addr %s170, 8
        %s172 = scalar_lea.vmem %s1, %s171
        %s173 = smul.u32 8, %s10
      $region32: #{encoder_forward.1} parent=23 // pred_fallthru
        _
    $region24: #{encoder_forward.1} parent=5 // pred_fallthru
      _
    %p174 = scmp.le.s32.totalorder 1, %s10
    %p175 = scmp.lt.s32.totalorder %s10, 5
    %p176 = pnand %p174, %p175
    %p177 = pneg %p176
    // Predicated region
    $region33: #{encoder_forward.1} parent=5 // pred_check
      _
    $region34: #{encoder_forward.1} parent=5 // pred_check_branch
      %179 = sbr.rel (%p176) target = $region36
    $region35: #{encoder_forward.1} parent=5 // pred_region
      %s180 = ssub.s32 %s10, 1
      %s181 = smul.u32 2, %s15
      %p182 = scmp.lt.s32.totalorder %s181, 7
      %s183 = scalar_select %p182, %s181, 7
      %s184 = smul.addr %s183, 2
      %s185 = smul.addr %s184, 8
      %s186 = scalar_lea.vmem %s0, %s185
      %p187 = pneg %p36
      %p188 = pneg %p33
      %s189 = smul.u32 8, %s15
      %p190 = scmp.lt.s32.totalorder %s189, 31
      %s191 = scalar_select %p190, %s189, 31
      %s192 = smul.addr %s191, 8
      %s193 = scalar_lea.vmem %s1, %s192
      %p194 = pneg %p62
      %p195 = pneg %p59
      %p196 = pneg %p83
      %p197 = pneg %p80
      %p198 = pneg %p104
      %p199 = pneg %p101
      %p200 = pneg %p130
      %p201 = pneg %p127
      %s202 = smul.u32 8, %s15
      %p203 = scmp.lt.s32.totalorder %s202, 31
      %s204 = scalar_select %p203, %s202, 31
      %s205 = smul.addr %s204, 8
      %s206 = scalar_lea.vmem %s4, %s205
      %s207 = smul.u32 2, %s15
      %p208 = scmp.lt.s32.totalorder %s207, 7
      %s209 = scalar_select %p208, %s207, 7
      %s210 = smul.addr %s209, 2
      %s211 = smul.addr %s210, 8
      %s212 = scalar_lea.vmem %s0, %s211
      %s213 = smul.u32 2, %s15
      %s214 = smul.u32 8, %s15
      %p215 = scmp.lt.s32.totalorder %s214, 31
      %s216 = scalar_select %p215, %s214, 31
      %s217 = smul.addr %s216, 8
      %s218 = scalar_lea.vmem %s1, %s217
      %s219 = smul.u32 8, %s15
      %s220 = smul.u32 8, %s15
      %p221 = scmp.lt.s32.totalorder %s220, 31
      %s222 = scalar_select %p221, %s220, 31
      %s223 = smul.addr %s222, 8
      %s224 = scalar_lea.vmem %s4, %s223
      %s225 = smul.u32 8, %s15
      %v226 = vld [vmem:[%s212] sm:$0xff]
      %v227 = vld [vmem:[%s212 + $0x8] sm:$0xff]
      %v228 = vld [vmem:[%s212 + $0x10] sm:$0xff]
      %v229 = vld [vmem:[%s212 + $0x18] sm:$0xff]
      %v230 = vunpack.c.0.s8 %v226
      %v231 = vunpack.c.0.s8 %v227
      %v232 = vunpack.c.1.s8 %v226
      %v233 = vunpack.c.1.s8 %v227
      %v234 = vunpack.c.2.s8 %v226
      %v235 = vunpack.c.2.s8 %v227
      %v236 = vunpack.c.3.s8 %v226
      %v237 = vunpack.c.3.s8 %v227
      %v238 = vunpack.c.0.s8 %v228
      %v239 = vunpack.c.0.s8 %v229
      %v240 = vunpack.c.1.s8 %v228
      %v241 = vunpack.c.1.s8 %v229
      %v242 = vunpack.c.2.s8 %v228
      %v243 = vunpack.c.2.s8 %v229
      %v244 = vunpack.c.3.s8 %v228
      %v245 = vunpack.c.3.s8 %v229
      %v246 = vcvt.s32.f32 %v230
      %v247 = vcvt.s32.f32 %v231
      %v248 = vcvt.s32.f32 %v232
      %v249 = vcvt.s32.f32 %v233
      %v250 = vcvt.s32.f32 %v234
      %v251 = vcvt.s32.f32 %v235
      %v252 = vcvt.s32.f32 %v236
      %v253 = vcvt.s32.f32 %v237
      %v254 = vcvt.s32.f32 %v238
      %v255 = vcvt.s32.f32 %v239
      %v256 = vcvt.s32.f32 %v240
      %v257 = vcvt.s32.f32 %v241
      %v258 = vcvt.s32.f32 %v242
      %v259 = vcvt.s32.f32 %v243
      %v260 = vcvt.s32.f32 %v244
      %v261 = vcvt.s32.f32 %v245
      %vm262 = vcmp.gt.f32.partialorder %v246, 0.0
      %vm263 = vcmp.gt.f32.partialorder %v247, 0.0
      %vm264 = vcmp.gt.f32.partialorder %v248, 0.0
      %vm265 = vcmp.gt.f32.partialorder %v249, 0.0
      %vm266 = vcmp.gt.f32.partialorder %v250, 0.0
      %vm267 = vcmp.gt.f32.partialorder %v251, 0.0
      %vm268 = vcmp.gt.f32.partialorder %v252, 0.0
      %vm269 = vcmp.gt.f32.partialorder %v253, 0.0
      %vm270 = vcmp.gt.f32.partialorder %v254, 0.0
      %vm271 = vcmp.gt.f32.partialorder %v255, 0.0
      %vm272 = vcmp.gt.f32.partialorder %v256, 0.0
      %vm273 = vcmp.gt.f32.partialorder %v257, 0.0
      %vm274 = vcmp.gt.f32.partialorder %v258, 0.0
      %vm275 = vcmp.gt.f32.partialorder %v259, 0.0
      %vm276 = vcmp.gt.f32.partialorder %v260, 0.0
      %vm277 = vcmp.gt.f32.partialorder %v261, 0.0
      %v278 = vsel %vm262, 0.0, -1e+09
      %v279 = vsel %vm263, 0.0, -1e+09
      %v280 = vsel %vm264, 0.0, -1e+09
      %v281 = vsel %vm265, 0.0, -1e+09
      %v282 = vsel %vm266, 0.0, -1e+09
      %v283 = vsel %vm267, 0.0, -1e+09
      %v284 = vsel %vm268, 0.0, -1e+09
      %v285 = vsel %vm269, 0.0, -1e+09
      %v286 = vsel %vm270, 0.0, -1e+09
      %v287 = vsel %vm271, 0.0, -1e+09
      %v288 = vsel %vm272, 0.0, -1e+09
      %v289 = vsel %vm273, 0.0, -1e+09
      %v290 = vsel %vm274, 0.0, -1e+09
      %v291 = vsel %vm275, 0.0, -1e+09
      %v292 = vsel %vm276, 0.0, -1e+09
      %v293 = vsel %vm277, 0.0, -1e+09
      %v294 = vld [vmem:[%s218] sm:$0xff]
      %v295 = vld [vmem:[%s218 + $0x8] sm:$0xff]
      %v296 = vld [vmem:[%s218 + $0x10] sm:$0xff]
      %v297 = vld [vmem:[%s218 + $0x18] sm:$0xff]
      %v298 = vld [vmem:[%s218 + $0x20] sm:$0xff]
      %v299 = vld [vmem:[%s218 + $0x28] sm:$0xff]
      %v300 = vld [vmem:[%s218 + $0x30] sm:$0xff]
      %v301 = vld [vmem:[%s218 + $0x38] sm:$0xff]
      %v302 = vld [vmem:[%s2] sm:$0xff]
      %304 = vset.pattern.permute.xlu0 0
      %305 = vperm.xlu0 %304, %v294
      %v306 = vpop.permute.xlu0 %305
      %309 = vset.pattern.permute.xlu0 0
      %310 = vperm.xlu0 %309, %v295
      %v311 = vpop.permute.xlu0 %310
      %314 = vset.pattern.permute.xlu0 0
      %315 = vperm.xlu0 %314, %v296
      %v316 = vpop.permute.xlu0 %315
      %319 = vset.pattern.permute.xlu0 0
      %320 = vperm.xlu0 %319, %v297
      %v321 = vpop.permute.xlu0 %320
      %324 = vset.pattern.permute.xlu0 0
      %325 = vperm.xlu0 %324, %v298
      %v326 = vpop.permute.xlu0 %325
      %329 = vset.pattern.permute.xlu0 0
      %330 = vperm.xlu0 %329, %v299
      %v331 = vpop.permute.xlu0 %330
      %334 = vset.pattern.permute.xlu0 0
      %335 = vperm.xlu0 %334, %v300
      %v336 = vpop.permute.xlu0 %335
      %339 = vset.pattern.permute.xlu0 0
      %340 = vperm.xlu0 %339, %v301
      %v341 = vpop.permute.xlu0 %340
      %v344 = vperm.slane %v302, 0
      %v345 = vperm.slane %v302, 4
      %v348 = vperm.slane %v344, 0
      %v349 = vperm.slane %v345, 0
      %v350 = vadd.f32 %v306, %v348
      %v351 = vadd.f32 %v306, %v349
      %v352 = vadd.f32 %v311, %v348
      %v353 = vadd.f32 %v311, %v349
      %v354 = vadd.f32 %v316, %v348
      %v355 = vadd.f32 %v316, %v349
      %v356 = vadd.f32 %v321, %v348
      %v357 = vadd.f32 %v321, %v349
      %v358 = vadd.f32 %v326, %v348
      %v359 = vadd.f32 %v326, %v349
      %v360 = vadd.f32 %v331, %v348
      %v361 = vadd.f32 %v331, %v349
      %v362 = vadd.f32 %v336, %v348
      %v363 = vadd.f32 %v336, %v349
      %v364 = vadd.f32 %v341, %v348
      %v365 = vadd.f32 %v341, %v349
      %vm366 = vcmp.gt.f32.partialorder %v350, 0.0
      %vm367 = vcmp.gt.f32.partialorder %v351, 0.0
      %vm368 = vcmp.gt.f32.partialorder %v352, 0.0
      %vm369 = vcmp.gt.f32.partialorder %v353, 0.0
      %vm370 = vcmp.gt.f32.partialorder %v354, 0.0
      %vm371 = vcmp.gt.f32.partialorder %v355, 0.0
      %vm372 = vcmp.gt.f32.partialorder %v356, 0.0
      %vm373 = vcmp.gt.f32.partialorder %v357, 0.0
      %vm374 = vcmp.gt.f32.partialorder %v358, 0.0
      %vm375 = vcmp.gt.f32.partialorder %v359, 0.0
      %vm376 = vcmp.gt.f32.partialorder %v360, 0.0
      %vm377 = vcmp.gt.f32.partialorder %v361, 0.0
      %vm378 = vcmp.gt.f32.partialorder %v362, 0.0
      %vm379 = vcmp.gt.f32.partialorder %v363, 0.0
      %vm380 = vcmp.gt.f32.partialorder %v364, 0.0
      %vm381 = vcmp.gt.f32.partialorder %v365, 0.0
      %v382 = vmul.f32 %v350, 0.2
      %v383 = vmul.f32 %v351, 0.2
      %v384 = vmul.f32 %v352, 0.2
      %v385 = vmul.f32 %v353, 0.2
      %v386 = vmul.f32 %v354, 0.2
      %v387 = vmul.f32 %v355, 0.2
      %v388 = vmul.f32 %v356, 0.2
      %v389 = vmul.f32 %v357, 0.2
      %v390 = vmul.f32 %v358, 0.2
      %v391 = vmul.f32 %v359, 0.2
      %v392 = vmul.f32 %v360, 0.2
      %v393 = vmul.f32 %v361, 0.2
      %v394 = vmul.f32 %v362, 0.2
      %v395 = vmul.f32 %v363, 0.2
      %v396 = vmul.f32 %v364, 0.2
      %v397 = vmul.f32 %v365, 0.2
      %v398 = vsel %vm366, %v350, %v382
      %v399 = vsel %vm367, %v351, %v383
      %v400 = vsel %vm368, %v352, %v384
      %v401 = vsel %vm369, %v353, %v385
      %v402 = vsel %vm370, %v354, %v386
      %v403 = vsel %vm371, %v355, %v387
      %v404 = vsel %vm372, %v356, %v388
      %v405 = vsel %vm373, %v357, %v389
      %v406 = vsel %vm374, %v358, %v390
      %v407 = vsel %vm375, %v359, %v391
      %v408 = vsel %vm376, %v360, %v392
      %v409 = vsel %vm377, %v361, %v393
      %v410 = vsel %vm378, %v362, %v394
      %v411 = vsel %vm379, %v363, %v395
      %v412 = vsel %vm380, %v364, %v396
      %v413 = vsel %vm381, %v365, %v397
      %v414 = vadd.f32 %v398, %v278
      %v415 = vadd.f32 %v399, %v279
      %v416 = vadd.f32 %v400, %v280
      %v417 = vadd.f32 %v401, %v281
      %v418 = vadd.f32 %v402, %v282
      %v419 = vadd.f32 %v403, %v283
      %v420 = vadd.f32 %v404, %v284
      %v421 = vadd.f32 %v405, %v285
      %v422 = vadd.f32 %v406, %v286
      %v423 = vadd.f32 %v407, %v287
      %v424 = vadd.f32 %v408, %v288
      %v425 = vadd.f32 %v409, %v289
      %v426 = vadd.f32 %v410, %v290
      %v427 = vadd.f32 %v411, %v291
      %v428 = vadd.f32 %v412, %v292
      %v429 = vadd.f32 %v413, %v293
      %v430 = vmax.f32 %v414, %v415
      %431 = vmax.xlane.f32.xlu0 %v430
      %v432 = vpop.xlane.xlu0 %431
      %v433 = vmax.f32 %v416, %v417
      %434 = vmax.xlane.f32.xlu0 %v433
      %v435 = vpop.xlane.xlu0 %434
      %v436 = vmax.f32 %v418, %v419
      %437 = vmax.xlane.f32.xlu0 %v436
      %v438 = vpop.xlane.xlu0 %437
      %v439 = vmax.f32 %v420, %v421
      %440 = vmax.xlane.f32.xlu0 %v439
      %v441 = vpop.xlane.xlu0 %440
      %v442 = vmax.f32 %v422, %v423
      %443 = vmax.xlane.f32.xlu0 %v442
      %v444 = vpop.xlane.xlu0 %443
      %v445 = vmax.f32 %v424, %v425
      %446 = vmax.xlane.f32.xlu0 %v445
      %v447 = vpop.xlane.xlu0 %446
      %v448 = vmax.f32 %v426, %v427
      %449 = vmax.xlane.f32.xlu0 %v448
      %v450 = vpop.xlane.xlu0 %449
      %v451 = vmax.f32 %v428, %v429
      %452 = vmax.xlane.f32.xlu0 %v451
      %v453 = vpop.xlane.xlu0 %452
      %v454 = vsub.f32 %v414, %v432
      %v455 = vsub.f32 %v415, %v432
      %v456 = vsub.f32 %v416, %v435
      %v457 = vsub.f32 %v417, %v435
      %v458 = vsub.f32 %v418, %v438
      %v459 = vsub.f32 %v419, %v438
      %v460 = vsub.f32 %v420, %v441
      %v461 = vsub.f32 %v421, %v441
      %v462 = vsub.f32 %v422, %v444
      %v463 = vsub.f32 %v423, %v444
      %v464 = vsub.f32 %v424, %v447
      %v465 = vsub.f32 %v425, %v447
      %v466 = vsub.f32 %v426, %v450
      %v467 = vsub.f32 %v427, %v450
      %v468 = vsub.f32 %v428, %v453
      %v469 = vsub.f32 %v429, %v453
      %v470 = vmul.f32 %v454, 1.442695
      %v471 = vpow.pop %v470
      %v472 = vmul.f32 %v455, 1.442695
      %v473 = vpow.pop %v472
      %v474 = vmul.f32 %v456, 1.442695
      %v475 = vpow.pop %v474
      %v476 = vmul.f32 %v457, 1.442695
      %v477 = vpow.pop %v476
      %v478 = vmul.f32 %v458, 1.442695
      %v479 = vpow.pop %v478
      %v480 = vmul.f32 %v459, 1.442695
      %v481 = vpow.pop %v480
      %v482 = vmul.f32 %v460, 1.442695
      %v483 = vpow.pop %v482
      %v484 = vmul.f32 %v461, 1.442695
      %v485 = vpow.pop %v484
      %v486 = vmul.f32 %v462, 1.442695
      %v487 = vpow.pop %v486
      %v488 = vmul.f32 %v463, 1.442695
      %v489 = vpow.pop %v488
      %v490 = vmul.f32 %v464, 1.442695
      %v491 = vpow.pop %v490
      %v492 = vmul.f32 %v465, 1.442695
      %v493 = vpow.pop %v492
      %v494 = vmul.f32 %v466, 1.442695
      %v495 = vpow.pop %v494
      %v496 = vmul.f32 %v467, 1.442695
      %v497 = vpow.pop %v496
      %v498 = vmul.f32 %v468, 1.442695
      %v499 = vpow.pop %v498
      %v500 = vmul.f32 %v469, 1.442695
      %v501 = vpow.pop %v500
      %v502 = vpack.c.bf16 %v475, %v471
      %v503 = vpack.c.bf16 %v477, %v473
      %v504 = vpack.c.bf16 %v483, %v479
      %v505 = vpack.c.bf16 %v485, %v481
      %v506 = vpack.c.bf16 %v491, %v487
      %v507 = vpack.c.bf16 %v493, %v489
      %v508 = vpack.c.bf16 %v499, %v495
      %v509 = vpack.c.bf16 %v501, %v497
      %v510 = vld [vmem:[%s3] sm:$0xf]
      %v511 = vld [vmem:[%s3 + $0x4] sm:$0xf]
      %v512 = vld [vmem:[%s3 + $0x8] sm:$0xf]
      %v513 = vld [vmem:[%s3 + $0xc] sm:$0xf]
      %v514 = vld [vmem:[%s3 + $0x10] sm:$0xf]
      %v515 = vld [vmem:[%s3 + $0x14] sm:$0xf]
      %v516 = vld [vmem:[%s3 + $0x18] sm:$0xf]
      %v517 = vld [vmem:[%s3 + $0x1c] sm:$0xf]
      %v518 = vld [vmem:[%s3 + $0x20] sm:$0xf]
      %v519 = vld [vmem:[%s3 + $0x24] sm:$0xf]
      %v520 = vld [vmem:[%s3 + $0x28] sm:$0xf]
      %v521 = vld [vmem:[%s3 + $0x2c] sm:$0xf]
      %v522 = vld [vmem:[%s3 + $0x30] sm:$0xf]
      %v523 = vld [vmem:[%s3 + $0x34] sm:$0xf]
      %v524 = vld [vmem:[%s3 + $0x38] sm:$0xf]
      %v525 = vld [vmem:[%s3 + $0x3c] sm:$0xf]
      %v526 = vld [vmem:[%s3 + $0x40] sm:$0xf]
      %v527 = vld [vmem:[%s3 + $0x44] sm:$0xf]
      %v528 = vld [vmem:[%s3 + $0x48] sm:$0xf]
      %v529 = vld [vmem:[%s3 + $0x4c] sm:$0xf]
      %v530 = vld [vmem:[%s3 + $0x50] sm:$0xf]
      %v531 = vld [vmem:[%s3 + $0x54] sm:$0xf]
      %v532 = vld [vmem:[%s3 + $0x58] sm:$0xf]
      %v533 = vld [vmem:[%s3 + $0x5c] sm:$0xf]
      %v534 = vld [vmem:[%s3 + $0x60] sm:$0xf]
      %v535 = vld [vmem:[%s3 + $0x64] sm:$0xf]
      %v536 = vld [vmem:[%s3 + $0x68] sm:$0xf]
      %v537 = vld [vmem:[%s3 + $0x6c] sm:$0xf]
      %v538 = vld [vmem:[%s3 + $0x70] sm:$0xf]
      %v539 = vld [vmem:[%s3 + $0x74] sm:$0xf]
      %v540 = vld [vmem:[%s3 + $0x78] sm:$0xf]
      %v541 = vld [vmem:[%s3 + $0x7c] sm:$0xf]
      %v574 = vunpack.c.l.b16 %v510
      %v575 = vunpack.c.l.b16 %v511
      %v576 = vunpack.c.l.b16 %v512
      %v577 = vunpack.c.l.b16 %v513
      %v578 = vunpack.c.l.b16 %v514
      %v579 = vunpack.c.l.b16 %v515
      %v580 = vunpack.c.l.b16 %v516
      %v581 = vunpack.c.l.b16 %v517
      %v582 = vunpack.c.l.b16 %v518
      %v583 = vunpack.c.l.b16 %v519
      %v584 = vunpack.c.l.b16 %v520
      %v585 = vunpack.c.l.b16 %v521
      %v586 = vunpack.c.l.b16 %v522
      %v587 = vunpack.c.l.b16 %v523
      %v588 = vunpack.c.l.b16 %v524
      %v589 = vunpack.c.l.b16 %v525
      %v590 = vunpack.c.l.b16 %v526
      %v591 = vunpack.c.l.b16 %v527
      %v592 = vunpack.c.l.b16 %v528
      %v593 = vunpack.c.l.b16 %v529
      %v594 = vunpack.c.l.b16 %v530
      %v595 = vunpack.c.l.b16 %v531
      %v596 = vunpack.c.l.b16 %v532
      %v597 = vunpack.c.l.b16 %v533
      %v598 = vunpack.c.l.b16 %v534
      %v599 = vunpack.c.l.b16 %v535
      %v600 = vunpack.c.l.b16 %v536
      %v601 = vunpack.c.l.b16 %v537
      %v602 = vunpack.c.l.b16 %v538
      %v603 = vunpack.c.l.b16 %v539
      %v604 = vunpack.c.l.b16 %v540
      %v605 = vunpack.c.l.b16 %v541
      %v606 = vpack.c.b16 %v575, %v574
      %v607 = vpack.c.b16 %v577, %v576
      %v608 = vpack.c.b16 %v579, %v578
      %v609 = vpack.c.b16 %v581, %v580
      %v610 = vpack.c.b16 %v583, %v582
      %v611 = vpack.c.b16 %v585, %v584
      %v612 = vpack.c.b16 %v587, %v586
      %v613 = vpack.c.b16 %v589, %v588
      %v614 = vpack.c.b16 %v591, %v590
      %v615 = vpack.c.b16 %v593, %v592
      %v616 = vpack.c.b16 %v595, %v594
      %v617 = vpack.c.b16 %v597, %v596
      %v618 = vpack.c.b16 %v599, %v598
      %v619 = vpack.c.b16 %v601, %v600
      %v620 = vpack.c.b16 %v603, %v602
      %v621 = vpack.c.b16 %v605, %v604
      %638 = vmatpush.bf16.msra.mxu0 %v613
      %639 = vmatpush.bf16.msra.mxu0 %v612
      %640 = vmatpush.bf16.msra.mxu0 %v611
      %641 = vmatpush.bf16.msra.mxu0 %v610
      %642 = vmatpush.bf16.msra.mxu0 %v609
      %643 = vmatpush.bf16.msra.mxu0 %v608
      %644 = vmatpush.bf16.msra.mxu0 %v607
      %645 = vmatpush.bf16.msra.mxu0 %v606
      %646 = vmatmul.bf16.gmra.mxu0 %v502
      %v647 = vpop.f32.mrf.mxu0
      %v648 = vadd.f32 0.0, %v647
      %v649 = vpop.f32.mrf.mxu0
      %v650 = vadd.f32 0.0, %v649
      %651 = vmatmul.bf16.gmra.mxu0 %v504
      %v652 = vpop.f32.mrf.mxu0
      %v653 = vadd.f32 0.0, %v652
      %v654 = vpop.f32.mrf.mxu0
      %v655 = vadd.f32 0.0, %v654
      %656 = vmatmul.bf16.gmra.mxu0 %v506
      %v657 = vpop.f32.mrf.mxu0
      %v658 = vadd.f32 0.0, %v657
      %v659 = vpop.f32.mrf.mxu0
      %v660 = vadd.f32 0.0, %v659
      %661 = vmatmul.bf16.gmra.mxu0 %v508
      %v662 = vpop.f32.mrf.mxu0
      %v663 = vadd.f32 0.0, %v662
      %v664 = vpop.f32.mrf.mxu0
      %v665 = vadd.f32 0.0, %v664
      %666 = vdwg.mxu0
      %667 = vmatpush.bf16.msra.mxu0 %v621
      %668 = vmatpush.bf16.msra.mxu0 %v620
      %669 = vmatpush.bf16.msra.mxu0 %v619
      %670 = vmatpush.bf16.msra.mxu0 %v618
      %671 = vmatpush.bf16.msra.mxu0 %v617
      %672 = vmatpush.bf16.msra.mxu0 %v616
      %673 = vmatpush.bf16.msra.mxu0 %v615
      %674 = vmatpush.bf16.msra.mxu0 %v614
      %675 = vmatmul.bf16.gmra.mxu0 %v503
      %v676 = vpop.f32.mrf.mxu0
      %v677 = vadd.f32 %v648, %v676
      %v678 = vpop.f32.mrf.mxu0
      %v679 = vadd.f32 %v650, %v678
      %680 = vmatmul.bf16.gmra.mxu0 %v505
      %v681 = vpop.f32.mrf.mxu0
      %v682 = vadd.f32 %v653, %v681
      %v683 = vpop.f32.mrf.mxu0
      %v684 = vadd.f32 %v655, %v683
      %685 = vmatmul.bf16.gmra.mxu0 %v507
      %v686 = vpop.f32.mrf.mxu0
      %v687 = vadd.f32 %v658, %v686
      %v688 = vpop.f32.mrf.mxu0
      %v689 = vadd.f32 %v660, %v688
      %690 = vmatmul.bf16.gmra.mxu0 %v509
      %v691 = vpop.f32.mrf.mxu0
      %v692 = vadd.f32 %v663, %v691
      %v693 = vpop.f32.mrf.mxu0
      %v694 = vadd.f32 %v665, %v693
      %695 = vdwg.mxu0
      %v696 = vrcp.pop %v677
      %v697 = vrcp.pop %v679
      %v698 = vrcp.pop %v682
      %v699 = vrcp.pop %v684
      %v700 = vrcp.pop %v687
      %v701 = vrcp.pop %v689
      %v702 = vrcp.pop %v692
      %v703 = vrcp.pop %v694
      %705 = vset.pattern.permute.xlu0 16
      %706 = vperm.xlu0 %705, %v696
      %v707 = vpop.permute.xlu0 %706
      %710 = vset.pattern.permute.xlu0 16
      %711 = vperm.xlu0 %710, %v697
      %v712 = vpop.permute.xlu0 %711
      %715 = vset.pattern.permute.xlu0 16
      %716 = vperm.xlu0 %715, %v698
      %v717 = vpop.permute.xlu0 %716
      %720 = vset.pattern.permute.xlu0 16
      %721 = vperm.xlu0 %720, %v699
      %v722 = vpop.permute.xlu0 %721
      %725 = vset.pattern.permute.xlu0 16
      %726 = vperm.xlu0 %725, %v700
      %v727 = vpop.permute.xlu0 %726
      %730 = vset.pattern.permute.xlu0 16
      %731 = vperm.xlu0 %730, %v701
      %v732 = vpop.permute.xlu0 %731
      %735 = vset.pattern.permute.xlu0 16
      %736 = vperm.xlu0 %735, %v702
      %v737 = vpop.permute.xlu0 %736
      %740 = vset.pattern.permute.xlu0 16
      %741 = vperm.xlu0 %740, %v703
      %v742 = vpop.permute.xlu0 %741
      %v744 = vmul.f32 %v677, %v707
      %v745 = vmul.f32 %v679, %v712
      %v746 = vmul.f32 %v682, %v717
      %v747 = vmul.f32 %v684, %v722
      %v748 = vmul.f32 %v687, %v727
      %v749 = vmul.f32 %v689, %v732
      %v750 = vmul.f32 %v692, %v737
      %v751 = vmul.f32 %v694, %v742
      %vm752 = vcmp.gt.f32.partialorder %v744, 0.0
      %vm753 = vcmp.gt.f32.partialorder %v745, 0.0
      %vm754 = vcmp.gt.f32.partialorder %v746, 0.0
      %vm755 = vcmp.gt.f32.partialorder %v747, 0.0
      %vm756 = vcmp.gt.f32.partialorder %v748, 0.0
      %vm757 = vcmp.gt.f32.partialorder %v749, 0.0
      %vm758 = vcmp.gt.f32.partialorder %v750, 0.0
      %vm759 = vcmp.gt.f32.partialorder %v751, 0.0
      %v760 = vmin.f32 %v744, 0.0
      %v761 = vmin.f32 %v745, 0.0
      %v762 = vmin.f32 %v746, 0.0
      %v763 = vmin.f32 %v747, 0.0
      %v764 = vmin.f32 %v748, 0.0
      %v765 = vmin.f32 %v749, 0.0
      %v766 = vmin.f32 %v750, 0.0
      %v767 = vmin.f32 %v751, 0.0
      %v768 = vmul.f32 %v760, 1.442695
      %v769 = vpow.pop %v768
      %v770 = vmul.f32 %v761, 1.442695
      %v771 = vpow.pop %v770
      %v772 = vmul.f32 %v762, 1.442695
      %v773 = vpow.pop %v772
      %v774 = vmul.f32 %v763, 1.442695
      %v775 = vpow.pop %v774
      %v776 = vmul.f32 %v764, 1.442695
      %v777 = vpow.pop %v776
      %v778 = vmul.f32 %v765, 1.442695
      %v779 = vpow.pop %v778
      %v780 = vmul.f32 %v766, 1.442695
      %v781 = vpow.pop %v780
      %v782 = vmul.f32 %v767, 1.442695
      %v783 = vpow.pop %v782
      %v784 = vsub.f32 %v769, 1.0
      %v785 = vsub.f32 %v771, 1.0
      %v786 = vsub.f32 %v773, 1.0
      %v787 = vsub.f32 %v775, 1.0
      %v788 = vsub.f32 %v777, 1.0
      %v789 = vsub.f32 %v779, 1.0
      %v790 = vsub.f32 %v781, 1.0
      %v791 = vsub.f32 %v783, 1.0
      %v792 = vsel %vm752, %v744, %v784
      %v793 = vsel %vm753, %v745, %v785
      %v794 = vsel %vm754, %v746, %v786
      %v795 = vsel %vm755, %v747, %v787
      %v796 = vsel %vm756, %v748, %v788
      %v797 = vsel %vm757, %v749, %v789
      %v798 = vsel %vm758, %v750, %v790
      %v799 = vsel %vm759, %v751, %v791
      %800 = vset.pattern.permute.xlu0 1
      %801 = vperm.xlu0 %800, %v294
      %v802 = vpop.permute.xlu0 %801
      %804 = vset.pattern.permute.xlu0 1
      %805 = vperm.xlu0 %804, %v295
      %v806 = vpop.permute.xlu0 %805
      %808 = vset.pattern.permute.xlu0 1
      %809 = vperm.xlu0 %808, %v296
      %v810 = vpop.permute.xlu0 %809
      %812 = vset.pattern.permute.xlu0 1
      %813 = vperm.xlu0 %812, %v297
      %v814 = vpop.permute.xlu0 %813
      %816 = vset.pattern.permute.xlu0 1
      %817 = vperm.xlu0 %816, %v298
      %v818 = vpop.permute.xlu0 %817
      %820 = vset.pattern.permute.xlu0 1
      %821 = vperm.xlu0 %820, %v299
      %v822 = vpop.permute.xlu0 %821
      %824 = vset.pattern.permute.xlu0 1
      %825 = vperm.xlu0 %824, %v300
      %v826 = vpop.permute.xlu0 %825
      %828 = vset.pattern.permute.xlu0 1
      %829 = vperm.xlu0 %828, %v301
      %v830 = vpop.permute.xlu0 %829
      %v832 = vperm.slane %v302, 1
      %v833 = vperm.slane %v302, 5
      %v836 = vperm.slane %v832, 1
      %v837 = vperm.slane %v833, 1
      %v838 = vadd.f32 %v802, %v836
      %v839 = vadd.f32 %v802, %v837
      %v840 = vadd.f32 %v806, %v836
      %v841 = vadd.f32 %v806, %v837
      %v842 = vadd.f32 %v810, %v836
      %v843 = vadd.f32 %v810, %v837
      %v844 = vadd.f32 %v814, %v836
      %v845 = vadd.f32 %v814, %v837
      %v846 = vadd.f32 %v818, %v836
      %v847 = vadd.f32 %v818, %v837
      %v848 = vadd.f32 %v822, %v836
      %v849 = vadd.f32 %v822, %v837
      %v850 = vadd.f32 %v826, %v836
      %v851 = vadd.f32 %v826, %v837
      %v852 = vadd.f32 %v830, %v836
      %v853 = vadd.f32 %v830, %v837
      %vm854 = vcmp.gt.f32.partialorder %v838, 0.0
      %vm855 = vcmp.gt.f32.partialorder %v839, 0.0
      %vm856 = vcmp.gt.f32.partialorder %v840, 0.0
      %vm857 = vcmp.gt.f32.partialorder %v841, 0.0
      %vm858 = vcmp.gt.f32.partialorder %v842, 0.0
      %vm859 = vcmp.gt.f32.partialorder %v843, 0.0
      %vm860 = vcmp.gt.f32.partialorder %v844, 0.0
      %vm861 = vcmp.gt.f32.partialorder %v845, 0.0
      %vm862 = vcmp.gt.f32.partialorder %v846, 0.0
      %vm863 = vcmp.gt.f32.partialorder %v847, 0.0
      %vm864 = vcmp.gt.f32.partialorder %v848, 0.0
      %vm865 = vcmp.gt.f32.partialorder %v849, 0.0
      %vm866 = vcmp.gt.f32.partialorder %v850, 0.0
      %vm867 = vcmp.gt.f32.partialorder %v851, 0.0
      %vm868 = vcmp.gt.f32.partialorder %v852, 0.0
      %vm869 = vcmp.gt.f32.partialorder %v853, 0.0
      %v870 = vmul.f32 %v838, 0.2
      %v871 = vmul.f32 %v839, 0.2
      %v872 = vmul.f32 %v840, 0.2
      %v873 = vmul.f32 %v841, 0.2
      %v874 = vmul.f32 %v842, 0.2
      %v875 = vmul.f32 %v843, 0.2
      %v876 = vmul.f32 %v844, 0.2
      %v877 = vmul.f32 %v845, 0.2
      %v878 = vmul.f32 %v846, 0.2
      %v879 = vmul.f32 %v847, 0.2
      %v880 = vmul.f32 %v848, 0.2
      %v881 = vmul.f32 %v849, 0.2
      %v882 = vmul.f32 %v850, 0.2
      %v883 = vmul.f32 %v851, 0.2
      %v884 = vmul.f32 %v852, 0.2
      %v885 = vmul.f32 %v853, 0.2
      %v886 = vsel %vm854, %v838, %v870
      %v887 = vsel %vm855, %v839, %v871
      %v888 = vsel %vm856, %v840, %v872
      %v889 = vsel %vm857, %v841, %v873
      %v890 = vsel %vm858, %v842, %v874
      %v891 = vsel %vm859, %v843, %v875
      %v892 = vsel %vm860, %v844, %v876
      %v893 = vsel %vm861, %v845, %v877
      %v894 = vsel %vm862, %v846, %v878
      %v895 = vsel %vm863, %v847, %v879
      %v896 = vsel %vm864, %v848, %v880
      %v897 = vsel %vm865, %v849, %v881
      %v898 = vsel %vm866, %v850, %v882
      %v899 = vsel %vm867, %v851, %v883
      %v900 = vsel %vm868, %v852, %v884
      %v901 = vsel %vm869, %v853, %v885
      %v902 = vadd.f32 %v886, %v278
      %v903 = vadd.f32 %v887, %v279
      %v904 = vadd.f32 %v888, %v280
      %v905 = vadd.f32 %v889, %v281
      %v906 = vadd.f32 %v890, %v282
      %v907 = vadd.f32 %v891, %v283
      %v908 = vadd.f32 %v892, %v284
      %v909 = vadd.f32 %v893, %v285
      %v910 = vadd.f32 %v894, %v286
      %v911 = vadd.f32 %v895, %v287
      %v912 = vadd.f32 %v896, %v288
      %v913 = vadd.f32 %v897, %v289
      %v914 = vadd.f32 %v898, %v290
      %v915 = vadd.f32 %v899, %v291
      %v916 = vadd.f32 %v900, %v292
      %v917 = vadd.f32 %v901, %v293
      %v918 = vmax.f32 %v902, %v903
      %919 = vmax.xlane.f32.xlu0 %v918
      %v920 = vpop.xlane.xlu0 %919
      %v921 = vmax.f32 %v904, %v905
      %922 = vmax.xlane.f32.xlu0 %v921
      %v923 = vpop.xlane.xlu0 %922
      %v924 = vmax.f32 %v906, %v907
      %925 = vmax.xlane.f32.xlu0 %v924
      %v926 = vpop.xlane.xlu0 %925
      %v927 = vmax.f32 %v908, %v909
      %928 = vmax.xlane.f32.xlu0 %v927
      %v929 = vpop.xlane.xlu0 %928
      %v930 = vmax.f32 %v910, %v911
      %931 = vmax.xlane.f32.xlu0 %v930
      %v932 = vpop.xlane.xlu0 %931
      %v933 = vmax.f32 %v912, %v913
      %934 = vmax.xlane.f32.xlu0 %v933
      %v935 = vpop.xlane.xlu0 %934
      %v936 = vmax.f32 %v914, %v915
      %937 = vmax.xlane.f32.xlu0 %v936
      %v938 = vpop.xlane.xlu0 %937
      %v939 = vmax.f32 %v916, %v917
      %940 = vmax.xlane.f32.xlu0 %v939
      %v941 = vpop.xlane.xlu0 %940
      %v942 = vsub.f32 %v902, %v920
      %v943 = vsub.f32 %v903, %v920
      %v944 = vsub.f32 %v904, %v923
      %v945 = vsub.f32 %v905, %v923
      %v946 = vsub.f32 %v906, %v926
      %v947 = vsub.f32 %v907, %v926
      %v948 = vsub.f32 %v908, %v929
      %v949 = vsub.f32 %v909, %v929
      %v950 = vsub.f32 %v910, %v932
      %v951 = vsub.f32 %v911, %v932
      %v952 = vsub.f32 %v912, %v935
      %v953 = vsub.f32 %v913, %v935
      %v954 = vsub.f32 %v914, %v938
      %v955 = vsub.f32 %v915, %v938
      %v956 = vsub.f32 %v916, %v941
      %v957 = vsub.f32 %v917, %v941
      %v958 = vmul.f32 %v942, 1.442695
      %v959 = vpow.pop %v958
      %v960 = vmul.f32 %v943, 1.442695
      %v961 = vpow.pop %v960
      %v962 = vmul.f32 %v944, 1.442695
      %v963 = vpow.pop %v962
      %v964 = vmul.f32 %v945, 1.442695
      %v965 = vpow.pop %v964
      %v966 = vmul.f32 %v946, 1.442695
      %v967 = vpow.pop %v966
      %v968 = vmul.f32 %v947, 1.442695
      %v969 = vpow.pop %v968
      %v970 = vmul.f32 %v948, 1.442695
      %v971 = vpow.pop %v970
      %v972 = vmul.f32 %v949, 1.442695
      %v973 = vpow.pop %v972
      %v974 = vmul.f32 %v950, 1.442695
      %v975 = vpow.pop %v974
      %v976 = vmul.f32 %v951, 1.442695
      %v977 = vpow.pop %v976
      %v978 = vmul.f32 %v952, 1.442695
      %v979 = vpow.pop %v978
      %v980 = vmul.f32 %v953, 1.442695
      %v981 = vpow.pop %v980
      %v982 = vmul.f32 %v954, 1.442695
      %v983 = vpow.pop %v982
      %v984 = vmul.f32 %v955, 1.442695
      %v985 = vpow.pop %v984
      %v986 = vmul.f32 %v956, 1.442695
      %v987 = vpow.pop %v986
      %v988 = vmul.f32 %v957, 1.442695
      %v989 = vpow.pop %v988
      %v990 = vpack.c.bf16 %v963, %v959
      %v991 = vpack.c.bf16 %v965, %v961
      %v992 = vpack.c.bf16 %v971, %v967
      %v993 = vpack.c.bf16 %v973, %v969
      %v994 = vpack.c.bf16 %v979, %v975
      %v995 = vpack.c.bf16 %v981, %v977
      %v996 = vpack.c.bf16 %v987, %v983
      %v997 = vpack.c.bf16 %v989, %v985
      %998 = vrot.lane.b32.xlu0 %v606, 111
      %v999 = vpop.permute.xlu0 %998
      %1000 = vrot.lane.b32.xlu0 %v607, 111
      %v1001 = vpop.permute.xlu0 %1000
      %1002 = vrot.lane.b32.xlu0 %v608, 111
      %v1003 = vpop.permute.xlu0 %1002
      %1004 = vrot.lane.b32.xlu0 %v609, 111
      %v1005 = vpop.permute.xlu0 %1004
      %1006 = vrot.lane.b32.xlu0 %v610, 111
      %v1007 = vpop.permute.xlu0 %1006
      %1008 = vrot.lane.b32.xlu0 %v611, 111
      %v1009 = vpop.permute.xlu0 %1008
      %1010 = vrot.lane.b32.xlu0 %v612, 111
      %v1011 = vpop.permute.xlu0 %1010
      %1012 = vrot.lane.b32.xlu0 %v613, 111
      %v1013 = vpop.permute.xlu0 %1012
      %1014 = vrot.lane.b32.xlu0 %v614, 111
      %v1015 = vpop.permute.xlu0 %1014
      %1016 = vrot.lane.b32.xlu0 %v615, 111
      %v1017 = vpop.permute.xlu0 %1016
      %1018 = vrot.lane.b32.xlu0 %v616, 111
      %v1019 = vpop.permute.xlu0 %1018
      %1020 = vrot.lane.b32.xlu0 %v617, 111
      %v1021 = vpop.permute.xlu0 %1020
      %1022 = vrot.lane.b32.xlu0 %v618, 111
      %v1023 = vpop.permute.xlu0 %1022
      %1024 = vrot.lane.b32.xlu0 %v619, 111
      %v1025 = vpop.permute.xlu0 %1024
      %1026 = vrot.lane.b32.xlu0 %v620, 111
      %v1027 = vpop.permute.xlu0 %1026
      %1028 = vrot.lane.b32.xlu0 %v621, 111
      %v1029 = vpop.permute.xlu0 %1028
      %1046 = vmatpush.bf16.msra.mxu0 %v1013
      %1047 = vmatpush.bf16.msra.mxu0 %v1011
      %1048 = vmatpush.bf16.msra.mxu0 %v1009
      %1049 = vmatpush.bf16.msra.mxu0 %v1007
      %1050 = vmatpush.bf16.msra.mxu0 %v1005
      %1051 = vmatpush.bf16.msra.mxu0 %v1003
      %1052 = vmatpush.bf16.msra.mxu0 %v1001
      %1053 = vmatpush.bf16.msra.mxu0 %v999
      %1054 = vmatmul.bf16.gmra.mxu0 %v990
      %v1055 = vpop.f32.mrf.mxu0
      %v1056 = vadd.f32 0.0, %v1055
      %v1057 = vpop.f32.mrf.mxu0
      %v1058 = vadd.f32 0.0, %v1057
      %1059 = vmatmul.bf16.gmra.mxu0 %v992
      %v1060 = vpop.f32.mrf.mxu0
      %v1061 = vadd.f32 0.0, %v1060
      %v1062 = vpop.f32.mrf.mxu0
      %v1063 = vadd.f32 0.0, %v1062
      %1064 = vmatmul.bf16.gmra.mxu0 %v994
      %v1065 = vpop.f32.mrf.mxu0
      %v1066 = vadd.f32 0.0, %v1065
      %v1067 = vpop.f32.mrf.mxu0
      %v1068 = vadd.f32 0.0, %v1067
      %1069 = vmatmul.bf16.gmra.mxu0 %v996
      %v1070 = vpop.f32.mrf.mxu0
      %v1071 = vadd.f32 0.0, %v1070
      %v1072 = vpop.f32.mrf.mxu0
      %v1073 = vadd.f32 0.0, %v1072
      %1074 = vdwg.mxu0
      %1075 = vmatpush.bf16.msra.mxu0 %v1029
      %1076 = vmatpush.bf16.msra.mxu0 %v1027
      %1077 = vmatpush.bf16.msra.mxu0 %v1025
      %1078 = vmatpush.bf16.msra.mxu0 %v1023
      %1079 = vmatpush.bf16.msra.mxu0 %v1021
      %1080 = vmatpush.bf16.msra.mxu0 %v1019
      %1081 = vmatpush.bf16.msra.mxu0 %v1017
      %1082 = vmatpush.bf16.msra.mxu0 %v1015
      %1083 = vmatmul.bf16.gmra.mxu0 %v991
      %v1084 = vpop.f32.mrf.mxu0
      %v1085 = vadd.f32 %v1056, %v1084
      %v1086 = vpop.f32.mrf.mxu0
      %v1087 = vadd.f32 %v1058, %v1086
      %1088 = vmatmul.bf16.gmra.mxu0 %v993
      %v1089 = vpop.f32.mrf.mxu0
      %v1090 = vadd.f32 %v1061, %v1089
      %v1091 = vpop.f32.mrf.mxu0
      %v1092 = vadd.f32 %v1063, %v1091
      %1093 = vmatmul.bf16.gmra.mxu0 %v995
      %v1094 = vpop.f32.mrf.mxu0
      %v1095 = vadd.f32 %v1066, %v1094
      %v1096 = vpop.f32.mrf.mxu0
      %v1097 = vadd.f32 %v1068, %v1096
      %1098 = vmatmul.bf16.gmra.mxu0 %v997
      %v1099 = vpop.f32.mrf.mxu0
      %v1100 = vadd.f32 %v1071, %v1099
      %v1101 = vpop.f32.mrf.mxu0
      %v1102 = vadd.f32 %v1073, %v1101
      %1103 = vdwg.mxu0
      %v1104 = vrcp.pop %v1085
      %v1105 = vrcp.pop %v1087
      %v1106 = vrcp.pop %v1090
      %v1107 = vrcp.pop %v1092
      %v1108 = vrcp.pop %v1095
      %v1109 = vrcp.pop %v1097
      %v1110 = vrcp.pop %v1100
      %v1111 = vrcp.pop %v1102
      %1113 = vset.pattern.permute.xlu0 16
      %1114 = vperm.xlu0 %1113, %v1104
      %v1115 = vpop.permute.xlu0 %1114
      %1118 = vset.pattern.permute.xlu0 16
      %1119 = vperm.xlu0 %1118, %v1105
      %v1120 = vpop.permute.xlu0 %1119
      %1123 = vset.pattern.permute.xlu0 16
      %1124 = vperm.xlu0 %1123, %v1106
      %v1125 = vpop.permute.xlu0 %1124
      %1128 = vset.pattern.permute.xlu0 16
      %1129 = vperm.xlu0 %1128, %v1107
      %v1130 = vpop.permute.xlu0 %1129
      %1133 = vset.pattern.permute.xlu0 16
      %1134 = vperm.xlu0 %1133, %v1108
      %v1135 = vpop.permute.xlu0 %1134
      %1138 = vset.pattern.permute.xlu0 16
      %1139 = vperm.xlu0 %1138, %v1109
      %v1140 = vpop.permute.xlu0 %1139
      %1143 = vset.pattern.permute.xlu0 16
      %1144 = vperm.xlu0 %1143, %v1110
      %v1145 = vpop.permute.xlu0 %1144
      %1148 = vset.pattern.permute.xlu0 16
      %1149 = vperm.xlu0 %1148, %v1111
      %v1150 = vpop.permute.xlu0 %1149
      %v1152 = vmul.f32 %v1085, %v1115
      %v1153 = vmul.f32 %v1087, %v1120
      %v1154 = vmul.f32 %v1090, %v1125
      %v1155 = vmul.f32 %v1092, %v1130
      %v1156 = vmul.f32 %v1095, %v1135
      %v1157 = vmul.f32 %v1097, %v1140
      %v1158 = vmul.f32 %v1100, %v1145
      %v1159 = vmul.f32 %v1102, %v1150
      %vm1160 = vcmp.gt.f32.partialorder %v1152, 0.0
      %vm1161 = vcmp.gt.f32.partialorder %v1153, 0.0
      %vm1162 = vcmp.gt.f32.partialorder %v1154, 0.0
      %vm1163 = vcmp.gt.f32.partialorder %v1155, 0.0
      %vm1164 = vcmp.gt.f32.partialorder %v1156, 0.0
      %vm1165 = vcmp.gt.f32.partialorder %v1157, 0.0
      %vm1166 = vcmp.gt.f32.partialorder %v1158, 0.0
      %vm1167 = vcmp.gt.f32.partialorder %v1159, 0.0
      %v1168 = vmin.f32 %v1152, 0.0
      %v1169 = vmin.f32 %v1153, 0.0
      %v1170 = vmin.f32 %v1154, 0.0
      %v1171 = vmin.f32 %v1155, 0.0
      %v1172 = vmin.f32 %v1156, 0.0
      %v1173 = vmin.f32 %v1157, 0.0
      %v1174 = vmin.f32 %v1158, 0.0
      %v1175 = vmin.f32 %v1159, 0.0
      %v1176 = vmul.f32 %v1168, 1.442695
      %v1177 = vpow.pop %v1176
      %v1178 = vmul.f32 %v1169, 1.442695
      %v1179 = vpow.pop %v1178
      %v1180 = vmul.f32 %v1170, 1.442695
      %v1181 = vpow.pop %v1180
      %v1182 = vmul.f32 %v1171, 1.442695
      %v1183 = vpow.pop %v1182
      %v1184 = vmul.f32 %v1172, 1.442695
      %v1185 = vpow.pop %v1184
      %v1186 = vmul.f32 %v1173, 1.442695
      %v1187 = vpow.pop %v1186
      %v1188 = vmul.f32 %v1174, 1.442695
      %v1189 = vpow.pop %v1188
      %v1190 = vmul.f32 %v1175, 1.442695
      %v1191 = vpow.pop %v1190
      %v1192 = vsub.f32 %v1177, 1.0
      %v1193 = vsub.f32 %v1179, 1.0
      %v1194 = vsub.f32 %v1181, 1.0
      %v1195 = vsub.f32 %v1183, 1.0
      %v1196 = vsub.f32 %v1185, 1.0
      %v1197 = vsub.f32 %v1187, 1.0
      %v1198 = vsub.f32 %v1189, 1.0
      %v1199 = vsub.f32 %v1191, 1.0
      %v1200 = vsel %vm1160, %v1152, %v1192
      %v1201 = vsel %vm1161, %v1153, %v1193
      %v1202 = vsel %vm1162, %v1154, %v1194
      %v1203 = vsel %vm1163, %v1155, %v1195
      %v1204 = vsel %vm1164, %v1156, %v1196
      %v1205 = vsel %vm1165, %v1157, %v1197
      %v1206 = vsel %vm1166, %v1158, %v1198
      %v1207 = vsel %vm1167, %v1159, %v1199
      %1208 = vset.pattern.permute.xlu0 2
      %1209 = vperm.xlu0 %1208, %v294
      %v1210 = vpop.permute.xlu0 %1209
      %1212 = vset.pattern.permute.xlu0 2
      %1213 = vperm.xlu0 %1212, %v295
      %v1214 = vpop.permute.xlu0 %1213
      %1216 = vset.pattern.permute.xlu0 2
      %1217 = vperm.xlu0 %1216, %v296
      %v1218 = vpop.permute.xlu0 %1217
      %1220 = vset.pattern.permute.xlu0 2
      %1221 = vperm.xlu0 %1220, %v297
      %v1222 = vpop.permute.xlu0 %1221
      %1224 = vset.pattern.permute.xlu0 2
      %1225 = vperm.xlu0 %1224, %v298
      %v1226 = vpop.permute.xlu0 %1225
      %1228 = vset.pattern.permute.xlu0 2
      %1229 = vperm.xlu0 %1228, %v299
      %v1230 = vpop.permute.xlu0 %1229
      %1232 = vset.pattern.permute.xlu0 2
      %1233 = vperm.xlu0 %1232, %v300
      %v1234 = vpop.permute.xlu0 %1233
      %1236 = vset.pattern.permute.xlu0 2
      %1237 = vperm.xlu0 %1236, %v301
      %v1238 = vpop.permute.xlu0 %1237
      %v1240 = vperm.slane %v302, 2
      %v1241 = vperm.slane %v302, 6
      %v1244 = vperm.slane %v1240, 2
      %v1245 = vperm.slane %v1241, 2
      %v1246 = vadd.f32 %v1210, %v1244
      %v1247 = vadd.f32 %v1210, %v1245
      %v1248 = vadd.f32 %v1214, %v1244
      %v1249 = vadd.f32 %v1214, %v1245
      %v1250 = vadd.f32 %v1218, %v1244
      %v1251 = vadd.f32 %v1218, %v1245
      %v1252 = vadd.f32 %v1222, %v1244
      %v1253 = vadd.f32 %v1222, %v1245
      %v1254 = vadd.f32 %v1226, %v1244
      %v1255 = vadd.f32 %v1226, %v1245
      %v1256 = vadd.f32 %v1230, %v1244
      %v1257 = vadd.f32 %v1230, %v1245
      %v1258 = vadd.f32 %v1234, %v1244
      %v1259 = vadd.f32 %v1234, %v1245
      %v1260 = vadd.f32 %v1238, %v1244
      %v1261 = vadd.f32 %v1238, %v1245
      %vm1262 = vcmp.gt.f32.partialorder %v1246, 0.0
      %vm1263 = vcmp.gt.f32.partialorder %v1247, 0.0
      %vm1264 = vcmp.gt.f32.partialorder %v1248, 0.0
      %vm1265 = vcmp.gt.f32.partialorder %v1249, 0.0
      %vm1266 = vcmp.gt.f32.partialorder %v1250, 0.0
      %vm1267 = vcmp.gt.f32.partialorder %v1251, 0.0
      %vm1268 = vcmp.gt.f32.partialorder %v1252, 0.0
      %vm1269 = vcmp.gt.f32.partialorder %v1253, 0.0
      %vm1270 = vcmp.gt.f32.partialorder %v1254, 0.0
      %vm1271 = vcmp.gt.f32.partialorder %v1255, 0.0
      %vm1272 = vcmp.gt.f32.partialorder %v1256, 0.0
      %vm1273 = vcmp.gt.f32.partialorder %v1257, 0.0
      %vm1274 = vcmp.gt.f32.partialorder %v1258, 0.0
      %vm1275 = vcmp.gt.f32.partialorder %v1259, 0.0
      %vm1276 = vcmp.gt.f32.partialorder %v1260, 0.0
      %vm1277 = vcmp.gt.f32.partialorder %v1261, 0.0
      %v1278 = vmul.f32 %v1246, 0.2
      %v1279 = vmul.f32 %v1247, 0.2
      %v1280 = vmul.f32 %v1248, 0.2
      %v1281 = vmul.f32 %v1249, 0.2
      %v1282 = vmul.f32 %v1250, 0.2
      %v1283 = vmul.f32 %v1251, 0.2
      %v1284 = vmul.f32 %v1252, 0.2
      %v1285 = vmul.f32 %v1253, 0.2
      %v1286 = vmul.f32 %v1254, 0.2
      %v1287 = vmul.f32 %v1255, 0.2
      %v1288 = vmul.f32 %v1256, 0.2
      %v1289 = vmul.f32 %v1257, 0.2
      %v1290 = vmul.f32 %v1258, 0.2
      %v1291 = vmul.f32 %v1259, 0.2
      %v1292 = vmul.f32 %v1260, 0.2
      %v1293 = vmul.f32 %v1261, 0.2
      %v1294 = vsel %vm1262, %v1246, %v1278
      %v1295 = vsel %vm1263, %v1247, %v1279
      %v1296 = vsel %vm1264, %v1248, %v1280
      %v1297 = vsel %vm1265, %v1249, %v1281
      %v1298 = vsel %vm1266, %v1250, %v1282
      %v1299 = vsel %vm1267, %v1251, %v1283
      %v1300 = vsel %vm1268, %v1252, %v1284
      %v1301 = vsel %vm1269, %v1253, %v1285
      %v1302 = vsel %vm1270, %v1254, %v1286
      %v1303 = vsel %vm1271, %v1255, %v1287
      %v1304 = vsel %vm1272, %v1256, %v1288
      %v1305 = vsel %vm1273, %v1257, %v1289
      %v1306 = vsel %vm1274, %v1258, %v1290
      %v1307 = vsel %vm1275, %v1259, %v1291
      %v1308 = vsel %vm1276, %v1260, %v1292
      %v1309 = vsel %vm1277, %v1261, %v1293
      %v1310 = vadd.f32 %v1294, %v278
      %v1311 = vadd.f32 %v1295, %v279
      %v1312 = vadd.f32 %v1296, %v280
      %v1313 = vadd.f32 %v1297, %v281
      %v1314 = vadd.f32 %v1298, %v282
      %v1315 = vadd.f32 %v1299, %v283
      %v1316 = vadd.f32 %v1300, %v284
      %v1317 = vadd.f32 %v1301, %v285
      %v1318 = vadd.f32 %v1302, %v286
      %v1319 = vadd.f32 %v1303, %v287
      %v1320 = vadd.f32 %v1304, %v288
      %v1321 = vadd.f32 %v1305, %v289
      %v1322 = vadd.f32 %v1306, %v290
      %v1323 = vadd.f32 %v1307, %v291
      %v1324 = vadd.f32 %v1308, %v292
      %v1325 = vadd.f32 %v1309, %v293
      %v1326 = vmax.f32 %v1310, %v1311
      %1327 = vmax.xlane.f32.xlu0 %v1326
      %v1328 = vpop.xlane.xlu0 %1327
      %v1329 = vmax.f32 %v1312, %v1313
      %1330 = vmax.xlane.f32.xlu0 %v1329
      %v1331 = vpop.xlane.xlu0 %1330
      %v1332 = vmax.f32 %v1314, %v1315
      %1333 = vmax.xlane.f32.xlu0 %v1332
      %v1334 = vpop.xlane.xlu0 %1333
      %v1335 = vmax.f32 %v1316, %v1317
      %1336 = vmax.xlane.f32.xlu0 %v1335
      %v1337 = vpop.xlane.xlu0 %1336
      %v1338 = vmax.f32 %v1318, %v1319
      %1339 = vmax.xlane.f32.xlu0 %v1338
      %v1340 = vpop.xlane.xlu0 %1339
      %v1341 = vmax.f32 %v1320, %v1321
      %1342 = vmax.xlane.f32.xlu0 %v1341
      %v1343 = vpop.xlane.xlu0 %1342
      %v1344 = vmax.f32 %v1322, %v1323
      %1345 = vmax.xlane.f32.xlu0 %v1344
      %v1346 = vpop.xlane.xlu0 %1345
      %v1347 = vmax.f32 %v1324, %v1325
      %1348 = vmax.xlane.f32.xlu0 %v1347
      %v1349 = vpop.xlane.xlu0 %1348
      %v1350 = vsub.f32 %v1310, %v1328
      %v1351 = vsub.f32 %v1311, %v1328
      %v1352 = vsub.f32 %v1312, %v1331
      %v1353 = vsub.f32 %v1313, %v1331
      %v1354 = vsub.f32 %v1314, %v1334
      %v1355 = vsub.f32 %v1315, %v1334
      %v1356 = vsub.f32 %v1316, %v1337
      %v1357 = vsub.f32 %v1317, %v1337
      %v1358 = vsub.f32 %v1318, %v1340
      %v1359 = vsub.f32 %v1319, %v1340
      %v1360 = vsub.f32 %v1320, %v1343
      %v1361 = vsub.f32 %v1321, %v1343
      %v1362 = vsub.f32 %v1322, %v1346
      %v1363 = vsub.f32 %v1323, %v1346
      %v1364 = vsub.f32 %v1324, %v1349
      %v1365 = vsub.f32 %v1325, %v1349
      %v1366 = vmul.f32 %v1350, 1.442695
      %v1367 = vpow.pop %v1366
      %v1368 = vmul.f32 %v1351, 1.442695
      %v1369 = vpow.pop %v1368
      %v1370 = vmul.f32 %v1352, 1.442695
      %v1371 = vpow.pop %v1370
      %v1372 = vmul.f32 %v1353, 1.442695
      %v1373 = vpow.pop %v1372
      %v1374 = vmul.f32 %v1354, 1.442695
      %v1375 = vpow.pop %v1374
      %v1376 = vmul.f32 %v1355, 1.442695
      %v1377 = vpow.pop %v1376
      %v1378 = vmul.f32 %v1356, 1.442695
      %v1379 = vpow.pop %v1378
      %v1380 = vmul.f32 %v1357, 1.442695
      %v1381 = vpow.pop %v1380
      %v1382 = vmul.f32 %v1358, 1.442695
      %v1383 = vpow.pop %v1382
      %v1384 = vmul.f32 %v1359, 1.442695
      %v1385 = vpow.pop %v1384
      %v1386 = vmul.f32 %v1360, 1.442695
      %v1387 = vpow.pop %v1386
      %v1388 = vmul.f32 %v1361, 1.442695
      %v1389 = vpow.pop %v1388
      %v1390 = vmul.f32 %v1362, 1.442695
      %v1391 = vpow.pop %v1390
      %v1392 = vmul.f32 %v1363, 1.442695
      %v1393 = vpow.pop %v1392
      %v1394 = vmul.f32 %v1364, 1.442695
      %v1395 = vpow.pop %v1394
      %v1396 = vmul.f32 %v1365, 1.442695
      %v1397 = vpow.pop %v1396
      %v1398 = vpack.c.bf16 %v1371, %v1367
      %v1399 = vpack.c.bf16 %v1373, %v1369
      %v1400 = vpack.c.bf16 %v1379, %v1375
      %v1401 = vpack.c.bf16 %v1381, %v1377
      %v1402 = vpack.c.bf16 %v1387, %v1383
      %v1403 = vpack.c.bf16 %v1389, %v1385
      %v1404 = vpack.c.bf16 %v1395, %v1391
      %v1405 = vpack.c.bf16 %v1397, %v1393
      %1406 = vrot.lane.b32.xlu0 %v606, 94
      %v1407 = vpop.permute.xlu0 %1406
      %1408 = vrot.lane.b32.xlu0 %v607, 94
      %v1409 = vpop.permute.xlu0 %1408
      %1410 = vrot.lane.b32.xlu0 %v608, 94
      %v1411 = vpop.permute.xlu0 %1410
      %1412 = vrot.lane.b32.xlu0 %v609, 94
      %v1413 = vpop.permute.xlu0 %1412
      %1414 = vrot.lane.b32.xlu0 %v610, 94
      %v1415 = vpop.permute.xlu0 %1414
      %1416 = vrot.lane.b32.xlu0 %v611, 94
      %v1417 = vpop.permute.xlu0 %1416
      %1418 = vrot.lane.b32.xlu0 %v612, 94
      %v1419 = vpop.permute.xlu0 %1418
      %1420 = vrot.lane.b32.xlu0 %v613, 94
      %v1421 = vpop.permute.xlu0 %1420
      %1422 = vrot.lane.b32.xlu0 %v614, 94
      %v1423 = vpop.permute.xlu0 %1422
      %1424 = vrot.lane.b32.xlu0 %v615, 94
      %v1425 = vpop.permute.xlu0 %1424
      %1426 = vrot.lane.b32.xlu0 %v616, 94
      %v1427 = vpop.permute.xlu0 %1426
      %1428 = vrot.lane.b32.xlu0 %v617, 94
      %v1429 = vpop.permute.xlu0 %1428
      %1430 = vrot.lane.b32.xlu0 %v618, 94
      %v1431 = vpop.permute.xlu0 %1430
      %1432 = vrot.lane.b32.xlu0 %v619, 94
      %v1433 = vpop.permute.xlu0 %1432
      %1434 = vrot.lane.b32.xlu0 %v620, 94
      %v1435 = vpop.permute.xlu0 %1434
      %1436 = vrot.lane.b32.xlu0 %v621, 94
      %v1437 = vpop.permute.xlu0 %1436
      %1454 = vmatpush.bf16.msra.mxu0 %v1421
      %1455 = vmatpush.bf16.msra.mxu0 %v1419
      %1456 = vmatpush.bf16.msra.mxu0 %v1417
      %1457 = vmatpush.bf16.msra.mxu0 %v1415
      %1458 = vmatpush.bf16.msra.mxu0 %v1413
      %1459 = vmatpush.bf16.msra.mxu0 %v1411
      %1460 = vmatpush.bf16.msra.mxu0 %v1409
      %1461 = vmatpush.bf16.msra.mxu0 %v1407
      %1462 = vmatmul.bf16.gmra.mxu0 %v1398
      %v1463 = vpop.f32.mrf.mxu0
      %v1464 = vadd.f32 0.0, %v1463
      %v1465 = vpop.f32.mrf.mxu0
      %v1466 = vadd.f32 0.0, %v1465
      %1467 = vmatmul.bf16.gmra.mxu0 %v1400
      %v1468 = vpop.f32.mrf.mxu0
      %v1469 = vadd.f32 0.0, %v1468
      %v1470 = vpop.f32.mrf.mxu0
      %v1471 = vadd.f32 0.0, %v1470
      %1472 = vmatmul.bf16.gmra.mxu0 %v1402
      %v1473 = vpop.f32.mrf.mxu0
      %v1474 = vadd.f32 0.0, %v1473
      %v1475 = vpop.f32.mrf.mxu0
      %v1476 = vadd.f32 0.0, %v1475
      %1477 = vmatmul.bf16.gmra.mxu0 %v1404
      %v1478 = vpop.f32.mrf.mxu0
      %v1479 = vadd.f32 0.0, %v1478
      %v1480 = vpop.f32.mrf.mxu0
      %v1481 = vadd.f32 0.0, %v1480
      %1482 = vdwg.mxu0
      %1483 = vmatpush.bf16.msra.mxu0 %v1437
      %1484 = vmatpush.bf16.msra.mxu0 %v1435
      %1485 = vmatpush.bf16.msra.mxu0 %v1433
      %1486 = vmatpush.bf16.msra.mxu0 %v1431
      %1487 = vmatpush.bf16.msra.mxu0 %v1429
      %1488 = vmatpush.bf16.msra.mxu0 %v1427
      %1489 = vmatpush.bf16.msra.mxu0 %v1425
      %1490 = vmatpush.bf16.msra.mxu0 %v1423
      %1491 = vmatmul.bf16.gmra.mxu0 %v1399
      %v1492 = vpop.f32.mrf.mxu0
      %v1493 = vadd.f32 %v1464, %v1492
      %v1494 = vpop.f32.mrf.mxu0
      %v1495 = vadd.f32 %v1466, %v1494
      %1496 = vmatmul.bf16.gmra.mxu0 %v1401
      %v1497 = vpop.f32.mrf.mxu0
      %v1498 = vadd.f32 %v1469, %v1497
      %v1499 = vpop.f32.mrf.mxu0
      %v1500 = vadd.f32 %v1471, %v1499
      %1501 = vmatmul.bf16.gmra.mxu0 %v1403
      %v1502 = vpop.f32.mrf.mxu0
      %v1503 = vadd.f32 %v1474, %v1502
      %v1504 = vpop.f32.mrf.mxu0
      %v1505 = vadd.f32 %v1476, %v1504
      %1506 = vmatmul.bf16.gmra.mxu0 %v1405
      %v1507 = vpop.f32.mrf.mxu0
      %v1508 = vadd.f32 %v1479, %v1507
      %v1509 = vpop.f32.mrf.mxu0
      %v1510 = vadd.f32 %v1481, %v1509
      %1511 = vdwg.mxu0
      %v1512 = vrcp.pop %v1493
      %v1513 = vrcp.pop %v1495
      %v1514 = vrcp.pop %v1498
      %v1515 = vrcp.pop %v1500
      %v1516 = vrcp.pop %v1503
      %v1517 = vrcp.pop %v1505
      %v1518 = vrcp.pop %v1508
      %v1519 = vrcp.pop %v1510
      %1521 = vset.pattern.permute.xlu0 16
      %1522 = vperm.xlu0 %1521, %v1512
      %v1523 = vpop.permute.xlu0 %1522
      %1526 = vset.pattern.permute.xlu0 16
      %1527 = vperm.xlu0 %1526, %v1513
      %v1528 = vpop.permute.xlu0 %1527
      %1531 = vset.pattern.permute.xlu0 16
      %1532 = vperm.xlu0 %1531, %v1514
      %v1533 = vpop.permute.xlu0 %1532
      %1536 = vset.pattern.permute.xlu0 16
      %1537 = vperm.xlu0 %1536, %v1515
      %v1538 = vpop.permute.xlu0 %1537
      %1541 = vset.pattern.permute.xlu0 16
      %1542 = vperm.xlu0 %1541, %v1516
      %v1543 = vpop.permute.xlu0 %1542
      %1546 = vset.pattern.permute.xlu0 16
      %1547 = vperm.xlu0 %1546, %v1517
      %v1548 = vpop.permute.xlu0 %1547
      %1551 = vset.pattern.permute.xlu0 16
      %1552 = vperm.xlu0 %1551, %v1518
      %v1553 = vpop.permute.xlu0 %1552
      %1556 = vset.pattern.permute.xlu0 16
      %1557 = vperm.xlu0 %1556, %v1519
      %v1558 = vpop.permute.xlu0 %1557
      %v1560 = vmul.f32 %v1493, %v1523
      %v1561 = vmul.f32 %v1495, %v1528
      %v1562 = vmul.f32 %v1498, %v1533
      %v1563 = vmul.f32 %v1500, %v1538
      %v1564 = vmul.f32 %v1503, %v1543
      %v1565 = vmul.f32 %v1505, %v1548
      %v1566 = vmul.f32 %v1508, %v1553
      %v1567 = vmul.f32 %v1510, %v1558
      %vm1568 = vcmp.gt.f32.partialorder %v1560, 0.0
      %vm1569 = vcmp.gt.f32.partialorder %v1561, 0.0
      %vm1570 = vcmp.gt.f32.partialorder %v1562, 0.0
      %vm1571 = vcmp.gt.f32.partialorder %v1563, 0.0
      %vm1572 = vcmp.gt.f32.partialorder %v1564, 0.0
      %vm1573 = vcmp.gt.f32.partialorder %v1565, 0.0
      %vm1574 = vcmp.gt.f32.partialorder %v1566, 0.0
      %vm1575 = vcmp.gt.f32.partialorder %v1567, 0.0
      %v1576 = vmin.f32 %v1560, 0.0
      %v1577 = vmin.f32 %v1561, 0.0
      %v1578 = vmin.f32 %v1562, 0.0
      %v1579 = vmin.f32 %v1563, 0.0
      %v1580 = vmin.f32 %v1564, 0.0
      %v1581 = vmin.f32 %v1565, 0.0
      %v1582 = vmin.f32 %v1566, 0.0
      %v1583 = vmin.f32 %v1567, 0.0
      %v1584 = vmul.f32 %v1576, 1.442695
      %v1585 = vpow.pop %v1584
      %v1586 = vmul.f32 %v1577, 1.442695
      %v1587 = vpow.pop %v1586
      %v1588 = vmul.f32 %v1578, 1.442695
      %v1589 = vpow.pop %v1588
      %v1590 = vmul.f32 %v1579, 1.442695
      %v1591 = vpow.pop %v1590
      %v1592 = vmul.f32 %v1580, 1.442695
      %v1593 = vpow.pop %v1592
      %v1594 = vmul.f32 %v1581, 1.442695
      %v1595 = vpow.pop %v1594
      %v1596 = vmul.f32 %v1582, 1.442695
      %v1597 = vpow.pop %v1596
      %v1598 = vmul.f32 %v1583, 1.442695
      %v1599 = vpow.pop %v1598
      %v1600 = vsub.f32 %v1585, 1.0
      %v1601 = vsub.f32 %v1587, 1.0
      %v1602 = vsub.f32 %v1589, 1.0
      %v1603 = vsub.f32 %v1591, 1.0
      %v1604 = vsub.f32 %v1593, 1.0
      %v1605 = vsub.f32 %v1595, 1.0
      %v1606 = vsub.f32 %v1597, 1.0
      %v1607 = vsub.f32 %v1599, 1.0
      %v1608 = vsel %vm1568, %v1560, %v1600
      %v1609 = vsel %vm1569, %v1561, %v1601
      %v1610 = vsel %vm1570, %v1562, %v1602
      %v1611 = vsel %vm1571, %v1563, %v1603
      %v1612 = vsel %vm1572, %v1564, %v1604
      %v1613 = vsel %vm1573, %v1565, %v1605
      %v1614 = vsel %vm1574, %v1566, %v1606
      %v1615 = vsel %vm1575, %v1567, %v1607
      %1616 = vset.pattern.permute.xlu0 3
      %1617 = vperm.xlu0 %1616, %v294
      %v1618 = vpop.permute.xlu0 %1617
      %1620 = vset.pattern.permute.xlu0 3
      %1621 = vperm.xlu0 %1620, %v295
      %v1622 = vpop.permute.xlu0 %1621
      %1624 = vset.pattern.permute.xlu0 3
      %1625 = vperm.xlu0 %1624, %v296
      %v1626 = vpop.permute.xlu0 %1625
      %1628 = vset.pattern.permute.xlu0 3
      %1629 = vperm.xlu0 %1628, %v297
      %v1630 = vpop.permute.xlu0 %1629
      %1632 = vset.pattern.permute.xlu0 3
      %1633 = vperm.xlu0 %1632, %v298
      %v1634 = vpop.permute.xlu0 %1633
      %1636 = vset.pattern.permute.xlu0 3
      %1637 = vperm.xlu0 %1636, %v299
      %v1638 = vpop.permute.xlu0 %1637
      %1640 = vset.pattern.permute.xlu0 3
      %1641 = vperm.xlu0 %1640, %v300
      %v1642 = vpop.permute.xlu0 %1641
      %1644 = vset.pattern.permute.xlu0 3
      %1645 = vperm.xlu0 %1644, %v301
      %v1646 = vpop.permute.xlu0 %1645
      %v1648 = vperm.slane %v302, 3
      %v1649 = vperm.slane %v302, 7
      %v1652 = vperm.slane %v1648, 3
      %v1653 = vperm.slane %v1649, 3
      %v1654 = vadd.f32 %v1618, %v1652
      %v1655 = vadd.f32 %v1618, %v1653
      %v1656 = vadd.f32 %v1622, %v1652
      %v1657 = vadd.f32 %v1622, %v1653
      %v1658 = vadd.f32 %v1626, %v1652
      %v1659 = vadd.f32 %v1626, %v1653
      %v1660 = vadd.f32 %v1630, %v1652
      %v1661 = vadd.f32 %v1630, %v1653
      %v1662 = vadd.f32 %v1634, %v1652
      %v1663 = vadd.f32 %v1634, %v1653
      %v1664 = vadd.f32 %v1638, %v1652
      %v1665 = vadd.f32 %v1638, %v1653
      %v1666 = vadd.f32 %v1642, %v1652
      %v1667 = vadd.f32 %v1642, %v1653
      %v1668 = vadd.f32 %v1646, %v1652
      %v1669 = vadd.f32 %v1646, %v1653
      %vm1670 = vcmp.gt.f32.partialorder %v1654, 0.0
      %vm1671 = vcmp.gt.f32.partialorder %v1655, 0.0
      %vm1672 = vcmp.gt.f32.partialorder %v1656, 0.0
      %vm1673 = vcmp.gt.f32.partialorder %v1657, 0.0
      %vm1674 = vcmp.gt.f32.partialorder %v1658, 0.0
      %vm1675 = vcmp.gt.f32.partialorder %v1659, 0.0
      %vm1676 = vcmp.gt.f32.partialorder %v1660, 0.0
      %vm1677 = vcmp.gt.f32.partialorder %v1661, 0.0
      %vm1678 = vcmp.gt.f32.partialorder %v1662, 0.0
      %vm1679 = vcmp.gt.f32.partialorder %v1663, 0.0
      %vm1680 = vcmp.gt.f32.partialorder %v1664, 0.0
      %vm1681 = vcmp.gt.f32.partialorder %v1665, 0.0
      %vm1682 = vcmp.gt.f32.partialorder %v1666, 0.0
      %vm1683 = vcmp.gt.f32.partialorder %v1667, 0.0
      %vm1684 = vcmp.gt.f32.partialorder %v1668, 0.0
      %vm1685 = vcmp.gt.f32.partialorder %v1669, 0.0
      %v1686 = vmul.f32 %v1654, 0.2
      %v1687 = vmul.f32 %v1655, 0.2
      %v1688 = vmul.f32 %v1656, 0.2
      %v1689 = vmul.f32 %v1657, 0.2
      %v1690 = vmul.f32 %v1658, 0.2
      %v1691 = vmul.f32 %v1659, 0.2
      %v1692 = vmul.f32 %v1660, 0.2
      %v1693 = vmul.f32 %v1661, 0.2
      %v1694 = vmul.f32 %v1662, 0.2
      %v1695 = vmul.f32 %v1663, 0.2
      %v1696 = vmul.f32 %v1664, 0.2
      %v1697 = vmul.f32 %v1665, 0.2
      %v1698 = vmul.f32 %v1666, 0.2
      %v1699 = vmul.f32 %v1667, 0.2
      %v1700 = vmul.f32 %v1668, 0.2
      %v1701 = vmul.f32 %v1669, 0.2
      %v1702 = vsel %vm1670, %v1654, %v1686
      %v1703 = vsel %vm1671, %v1655, %v1687
      %v1704 = vsel %vm1672, %v1656, %v1688
      %v1705 = vsel %vm1673, %v1657, %v1689
      %v1706 = vsel %vm1674, %v1658, %v1690
      %v1707 = vsel %vm1675, %v1659, %v1691
      %v1708 = vsel %vm1676, %v1660, %v1692
      %v1709 = vsel %vm1677, %v1661, %v1693
      %v1710 = vsel %vm1678, %v1662, %v1694
      %v1711 = vsel %vm1679, %v1663, %v1695
      %v1712 = vsel %vm1680, %v1664, %v1696
      %v1713 = vsel %vm1681, %v1665, %v1697
      %v1714 = vsel %vm1682, %v1666, %v1698
      %v1715 = vsel %vm1683, %v1667, %v1699
      %v1716 = vsel %vm1684, %v1668, %v1700
      %v1717 = vsel %vm1685, %v1669, %v1701
      %v1718 = vadd.f32 %v1702, %v278
      %v1719 = vadd.f32 %v1703, %v279
      %v1720 = vadd.f32 %v1704, %v280
      %v1721 = vadd.f32 %v1705, %v281
      %v1722 = vadd.f32 %v1706, %v282
      %v1723 = vadd.f32 %v1707, %v283
      %v1724 = vadd.f32 %v1708, %v284
      %v1725 = vadd.f32 %v1709, %v285
      %v1726 = vadd.f32 %v1710, %v286
      %v1727 = vadd.f32 %v1711, %v287
      %v1728 = vadd.f32 %v1712, %v288
      %v1729 = vadd.f32 %v1713, %v289
      %v1730 = vadd.f32 %v1714, %v290
      %v1731 = vadd.f32 %v1715, %v291
      %v1732 = vadd.f32 %v1716, %v292
      %v1733 = vadd.f32 %v1717, %v293
      %v1734 = vmax.f32 %v1718, %v1719
      %1735 = vmax.xlane.f32.xlu0 %v1734
      %v1736 = vpop.xlane.xlu0 %1735
      %v1737 = vmax.f32 %v1720, %v1721
      %1738 = vmax.xlane.f32.xlu0 %v1737
      %v1739 = vpop.xlane.xlu0 %1738
      %v1740 = vmax.f32 %v1722, %v1723
      %1741 = vmax.xlane.f32.xlu0 %v1740
      %v1742 = vpop.xlane.xlu0 %1741
      %v1743 = vmax.f32 %v1724, %v1725
      %1744 = vmax.xlane.f32.xlu0 %v1743
      %v1745 = vpop.xlane.xlu0 %1744
      %v1746 = vmax.f32 %v1726, %v1727
      %1747 = vmax.xlane.f32.xlu0 %v1746
      %v1748 = vpop.xlane.xlu0 %1747
      %v1749 = vmax.f32 %v1728, %v1729
      %1750 = vmax.xlane.f32.xlu0 %v1749
      %v1751 = vpop.xlane.xlu0 %1750
      %v1752 = vmax.f32 %v1730, %v1731
      %1753 = vmax.xlane.f32.xlu0 %v1752
      %v1754 = vpop.xlane.xlu0 %1753
      %v1755 = vmax.f32 %v1732, %v1733
      %1756 = vmax.xlane.f32.xlu0 %v1755
      %v1757 = vpop.xlane.xlu0 %1756
      %v1758 = vsub.f32 %v1718, %v1736
      %v1759 = vsub.f32 %v1719, %v1736
      %v1760 = vsub.f32 %v1720, %v1739
      %v1761 = vsub.f32 %v1721, %v1739
      %v1762 = vsub.f32 %v1722, %v1742
      %v1763 = vsub.f32 %v1723, %v1742
      %v1764 = vsub.f32 %v1724, %v1745
      %v1765 = vsub.f32 %v1725, %v1745
      %v1766 = vsub.f32 %v1726, %v1748
      %v1767 = vsub.f32 %v1727, %v1748
      %v1768 = vsub.f32 %v1728, %v1751
      %v1769 = vsub.f32 %v1729, %v1751
      %v1770 = vsub.f32 %v1730, %v1754
      %v1771 = vsub.f32 %v1731, %v1754
      %v1772 = vsub.f32 %v1732, %v1757
      %v1773 = vsub.f32 %v1733, %v1757
      %v1774 = vmul.f32 %v1758, 1.442695
      %v1775 = vpow.pop %v1774
      %v1776 = vmul.f32 %v1759, 1.442695
      %v1777 = vpow.pop %v1776
      %v1778 = vmul.f32 %v1760, 1.442695
      %v1779 = vpow.pop %v1778
      %v1780 = vmul.f32 %v1761, 1.442695
      %v1781 = vpow.pop %v1780
      %v1782 = vmul.f32 %v1762, 1.442695
      %v1783 = vpow.pop %v1782
      %v1784 = vmul.f32 %v1763, 1.442695
      %v1785 = vpow.pop %v1784
      %v1786 = vmul.f32 %v1764, 1.442695
      %v1787 = vpow.pop %v1786
      %v1788 = vmul.f32 %v1765, 1.442695
      %v1789 = vpow.pop %v1788
      %v1790 = vmul.f32 %v1766, 1.442695
      %v1791 = vpow.pop %v1790
      %v1792 = vmul.f32 %v1767, 1.442695
      %v1793 = vpow.pop %v1792
      %v1794 = vmul.f32 %v1768, 1.442695
      %v1795 = vpow.pop %v1794
      %v1796 = vmul.f32 %v1769, 1.442695
      %v1797 = vpow.pop %v1796
      %v1798 = vmul.f32 %v1770, 1.442695
      %v1799 = vpow.pop %v1798
      %v1800 = vmul.f32 %v1771, 1.442695
      %v1801 = vpow.pop %v1800
      %v1802 = vmul.f32 %v1772, 1.442695
      %v1803 = vpow.pop %v1802
      %v1804 = vmul.f32 %v1773, 1.442695
      %v1805 = vpow.pop %v1804
      %v1806 = vpack.c.bf16 %v1779, %v1775
      %v1807 = vpack.c.bf16 %v1781, %v1777
      %v1808 = vpack.c.bf16 %v1787, %v1783
      %v1809 = vpack.c.bf16 %v1789, %v1785
      %v1810 = vpack.c.bf16 %v1795, %v1791
      %v1811 = vpack.c.bf16 %v1797, %v1793
      %v1812 = vpack.c.bf16 %v1803, %v1799
      %v1813 = vpack.c.bf16 %v1805, %v1801
      %1814 = vrot.lane.b32.xlu0 %v606, 77
      %v1815 = vpop.permute.xlu0 %1814
      %1816 = vrot.lane.b32.xlu0 %v607, 77
      %v1817 = vpop.permute.xlu0 %1816
      %1818 = vrot.lane.b32.xlu0 %v608, 77
      %v1819 = vpop.permute.xlu0 %1818
      %1820 = vrot.lane.b32.xlu0 %v609, 77
      %v1821 = vpop.permute.xlu0 %1820
      %1822 = vrot.lane.b32.xlu0 %v610, 77
      %v1823 = vpop.permute.xlu0 %1822
      %1824 = vrot.lane.b32.xlu0 %v611, 77
      %v1825 = vpop.permute.xlu0 %1824
      %1826 = vrot.lane.b32.xlu0 %v612, 77
      %v1827 = vpop.permute.xlu0 %1826
      %1828 = vrot.lane.b32.xlu0 %v613, 77
      %v1829 = vpop.permute.xlu0 %1828
      %1830 = vrot.lane.b32.xlu0 %v614, 77
      %v1831 = vpop.permute.xlu0 %1830
      %1832 = vrot.lane.b32.xlu0 %v615, 77
      %v1833 = vpop.permute.xlu0 %1832
      %1834 = vrot.lane.b32.xlu0 %v616, 77
      %v1835 = vpop.permute.xlu0 %1834
      %1836 = vrot.lane.b32.xlu0 %v617, 77
      %v1837 = vpop.permute.xlu0 %1836
      %1838 = vrot.lane.b32.xlu0 %v618, 77
      %v1839 = vpop.permute.xlu0 %1838
      %1840 = vrot.lane.b32.xlu0 %v619, 77
      %v1841 = vpop.permute.xlu0 %1840
      %1842 = vrot.lane.b32.xlu0 %v620, 77
      %v1843 = vpop.permute.xlu0 %1842
      %1844 = vrot.lane.b32.xlu0 %v621, 77
      %v1845 = vpop.permute.xlu0 %1844
      %1862 = vmatpush.bf16.msra.mxu0 %v1829
      %1863 = vmatpush.bf16.msra.mxu0 %v1827
      %1864 = vmatpush.bf16.msra.mxu0 %v1825
      %1865 = vmatpush.bf16.msra.mxu0 %v1823
      %1866 = vmatpush.bf16.msra.mxu0 %v1821
      %1867 = vmatpush.bf16.msra.mxu0 %v1819
      %1868 = vmatpush.bf16.msra.mxu0 %v1817
      %1869 = vmatpush.bf16.msra.mxu0 %v1815
      %1870 = vmatmul.bf16.gmra.mxu0 %v1806
      %v1871 = vpop.f32.mrf.mxu0
      %v1872 = vadd.f32 0.0, %v1871
      %v1873 = vpop.f32.mrf.mxu0
      %v1874 = vadd.f32 0.0, %v1873
      %1875 = vmatmul.bf16.gmra.mxu0 %v1808
      %v1876 = vpop.f32.mrf.mxu0
      %v1877 = vadd.f32 0.0, %v1876
      %v1878 = vpop.f32.mrf.mxu0
      %v1879 = vadd.f32 0.0, %v1878
      %1880 = vmatmul.bf16.gmra.mxu0 %v1810
      %v1881 = vpop.f32.mrf.mxu0
      %v1882 = vadd.f32 0.0, %v1881
      %v1883 = vpop.f32.mrf.mxu0
      %v1884 = vadd.f32 0.0, %v1883
      %1885 = vmatmul.bf16.gmra.mxu0 %v1812
      %v1886 = vpop.f32.mrf.mxu0
      %v1887 = vadd.f32 0.0, %v1886
      %v1888 = vpop.f32.mrf.mxu0
      %v1889 = vadd.f32 0.0, %v1888
      %1890 = vdwg.mxu0
      %1891 = vmatpush.bf16.msra.mxu0 %v1845
      %1892 = vmatpush.bf16.msra.mxu0 %v1843
      %1893 = vmatpush.bf16.msra.mxu0 %v1841
      %1894 = vmatpush.bf16.msra.mxu0 %v1839
      %1895 = vmatpush.bf16.msra.mxu0 %v1837
      %1896 = vmatpush.bf16.msra.mxu0 %v1835
      %1897 = vmatpush.bf16.msra.mxu0 %v1833
      %1898 = vmatpush.bf16.msra.mxu0 %v1831
      %1899 = vmatmul.bf16.gmra.mxu0 %v1807
      %v1900 = vpop.f32.mrf.mxu0
      %v1901 = vadd.f32 %v1872, %v1900
      %v1902 = vpop.f32.mrf.mxu0
      %v1903 = vadd.f32 %v1874, %v1902
      %1904 = vmatmul.bf16.gmra.mxu0 %v1809
      %v1905 = vpop.f32.mrf.mxu0
      %v1906 = vadd.f32 %v1877, %v1905
      %v1907 = vpop.f32.mrf.mxu0
      %v1908 = vadd.f32 %v1879, %v1907
      %1909 = vmatmul.bf16.gmra.mxu0 %v1811
      %v1910 = vpop.f32.mrf.mxu0
      %v1911 = vadd.f32 %v1882, %v1910
      %v1912 = vpop.f32.mrf.mxu0
      %v1913 = vadd.f32 %v1884, %v1912
      %1914 = vmatmul.bf16.gmra.mxu0 %v1813
      %v1915 = vpop.f32.mrf.mxu0
      %v1916 = vadd.f32 %v1887, %v1915
      %v1917 = vpop.f32.mrf.mxu0
      %v1918 = vadd.f32 %v1889, %v1917
      %1919 = vdwg.mxu0
      %v1920 = vrcp.pop %v1901
      %v1921 = vrcp.pop %v1903
      %v1922 = vrcp.pop %v1906
      %v1923 = vrcp.pop %v1908
      %v1924 = vrcp.pop %v1911
      %v1925 = vrcp.pop %v1913
      %v1926 = vrcp.pop %v1916
      %v1927 = vrcp.pop %v1918
      %1929 = vset.pattern.permute.xlu0 16
      %1930 = vperm.xlu0 %1929, %v1920
      %v1931 = vpop.permute.xlu0 %1930
      %1934 = vset.pattern.permute.xlu0 16
      %1935 = vperm.xlu0 %1934, %v1921
      %v1936 = vpop.permute.xlu0 %1935
      %1939 = vset.pattern.permute.xlu0 16
      %1940 = vperm.xlu0 %1939, %v1922
      %v1941 = vpop.permute.xlu0 %1940
      %1944 = vset.pattern.permute.xlu0 16
      %1945 = vperm.xlu0 %1944, %v1923
      %v1946 = vpop.permute.xlu0 %1945
      %1949 = vset.pattern.permute.xlu0 16
      %1950 = vperm.xlu0 %1949, %v1924
      %v1951 = vpop.permute.xlu0 %1950
      %1954 = vset.pattern.permute.xlu0 16
      %1955 = vperm.xlu0 %1954, %v1925
      %v1956 = vpop.permute.xlu0 %1955
      %1959 = vset.pattern.permute.xlu0 16
      %1960 = vperm.xlu0 %1959, %v1926
      %v1961 = vpop.permute.xlu0 %1960
      %1964 = vset.pattern.permute.xlu0 16
      %1965 = vperm.xlu0 %1964, %v1927
      %v1966 = vpop.permute.xlu0 %1965
      %v1968 = vmul.f32 %v1901, %v1931
      %v1969 = vmul.f32 %v1903, %v1936
      %v1970 = vmul.f32 %v1906, %v1941
      %v1971 = vmul.f32 %v1908, %v1946
      %v1972 = vmul.f32 %v1911, %v1951
      %v1973 = vmul.f32 %v1913, %v1956
      %v1974 = vmul.f32 %v1916, %v1961
      %v1975 = vmul.f32 %v1918, %v1966
      %vm1976 = vcmp.gt.f32.partialorder %v1968, 0.0
      %vm1977 = vcmp.gt.f32.partialorder %v1969, 0.0
      %vm1978 = vcmp.gt.f32.partialorder %v1970, 0.0
      %vm1979 = vcmp.gt.f32.partialorder %v1971, 0.0
      %vm1980 = vcmp.gt.f32.partialorder %v1972, 0.0
      %vm1981 = vcmp.gt.f32.partialorder %v1973, 0.0
      %vm1982 = vcmp.gt.f32.partialorder %v1974, 0.0
      %vm1983 = vcmp.gt.f32.partialorder %v1975, 0.0
      %v1984 = vmin.f32 %v1968, 0.0
      %v1985 = vmin.f32 %v1969, 0.0
      %v1986 = vmin.f32 %v1970, 0.0
      %v1987 = vmin.f32 %v1971, 0.0
      %v1988 = vmin.f32 %v1972, 0.0
      %v1989 = vmin.f32 %v1973, 0.0
      %v1990 = vmin.f32 %v1974, 0.0
      %v1991 = vmin.f32 %v1975, 0.0
      %v1992 = vmul.f32 %v1984, 1.442695
      %v1993 = vpow.pop %v1992
      %v1994 = vmul.f32 %v1985, 1.442695
      %v1995 = vpow.pop %v1994
      %v1996 = vmul.f32 %v1986, 1.442695
      %v1997 = vpow.pop %v1996
      %v1998 = vmul.f32 %v1987, 1.442695
      %v1999 = vpow.pop %v1998
      %v2000 = vmul.f32 %v1988, 1.442695
      %v2001 = vpow.pop %v2000
      %v2002 = vmul.f32 %v1989, 1.442695
      %v2003 = vpow.pop %v2002
      %v2004 = vmul.f32 %v1990, 1.442695
      %v2005 = vpow.pop %v2004
      %v2006 = vmul.f32 %v1991, 1.442695
      %v2007 = vpow.pop %v2006
      %v2008 = vsub.f32 %v1993, 1.0
      %v2009 = vsub.f32 %v1995, 1.0
      %v2010 = vsub.f32 %v1997, 1.0
      %v2011 = vsub.f32 %v1999, 1.0
      %v2012 = vsub.f32 %v2001, 1.0
      %v2013 = vsub.f32 %v2003, 1.0
      %v2014 = vsub.f32 %v2005, 1.0
      %v2015 = vsub.f32 %v2007, 1.0
      %v2016 = vsel %vm1976, %v1968, %v2008
      %v2017 = vsel %vm1977, %v1969, %v2009
      %v2018 = vsel %vm1978, %v1970, %v2010
      %v2019 = vsel %vm1979, %v1971, %v2011
      %v2020 = vsel %vm1980, %v1972, %v2012
      %v2021 = vsel %vm1981, %v1973, %v2013
      %v2022 = vsel %vm1982, %v1974, %v2014
      %v2023 = vsel %vm1983, %v1975, %v2015
      %2032 = vrot.lane.b32.xlu0 %v1200, 16
      %v2033 = vpop.permute.xlu0 %2032
      %2034 = vrot.lane.b32.xlu0 %v1201, 16
      %v2035 = vpop.permute.xlu0 %2034
      %2036 = vrot.lane.b32.xlu0 %v1202, 16
      %v2037 = vpop.permute.xlu0 %2036
      %2038 = vrot.lane.b32.xlu0 %v1203, 16
      %v2039 = vpop.permute.xlu0 %2038
      %2040 = vrot.lane.b32.xlu0 %v1204, 16
      %v2041 = vpop.permute.xlu0 %2040
      %2042 = vrot.lane.b32.xlu0 %v1205, 16
      %v2043 = vpop.permute.xlu0 %2042
      %2044 = vrot.lane.b32.xlu0 %v1206, 16
      %v2045 = vpop.permute.xlu0 %2044
      %2046 = vrot.lane.b32.xlu0 %v1207, 16
      %v2047 = vpop.permute.xlu0 %2046
      %2064 = vrot.lane.b32.xlu0 %v1608, 32
      %v2065 = vpop.permute.xlu0 %2064
      %2066 = vrot.lane.b32.xlu0 %v1609, 32
      %v2067 = vpop.permute.xlu0 %2066
      %2068 = vrot.lane.b32.xlu0 %v1610, 32
      %v2069 = vpop.permute.xlu0 %2068
      %2070 = vrot.lane.b32.xlu0 %v1611, 32
      %v2071 = vpop.permute.xlu0 %2070
      %2072 = vrot.lane.b32.xlu0 %v1612, 32
      %v2073 = vpop.permute.xlu0 %2072
      %2074 = vrot.lane.b32.xlu0 %v1613, 32
      %v2075 = vpop.permute.xlu0 %2074
      %2076 = vrot.lane.b32.xlu0 %v1614, 32
      %v2077 = vpop.permute.xlu0 %2076
      %2078 = vrot.lane.b32.xlu0 %v1615, 32
      %v2079 = vpop.permute.xlu0 %2078
      %2096 = vrot.lane.b32.xlu0 %v2016, 48
      %v2097 = vpop.permute.xlu0 %2096
      %2098 = vrot.lane.b32.xlu0 %v2017, 48
      %v2099 = vpop.permute.xlu0 %2098
      %2100 = vrot.lane.b32.xlu0 %v2018, 48
      %v2101 = vpop.permute.xlu0 %2100
      %2102 = vrot.lane.b32.xlu0 %v2019, 48
      %v2103 = vpop.permute.xlu0 %2102
      %2104 = vrot.lane.b32.xlu0 %v2020, 48
      %v2105 = vpop.permute.xlu0 %2104
      %2106 = vrot.lane.b32.xlu0 %v2021, 48
      %v2107 = vpop.permute.xlu0 %2106
      %2108 = vrot.lane.b32.xlu0 %v2022, 48
      %v2109 = vpop.permute.xlu0 %2108
      %2110 = vrot.lane.b32.xlu0 %v2023, 48
      %v2111 = vpop.permute.xlu0 %2110
      %vm2120 = vcmask 130048
      %v2121 = vsel %vm2120, %v792, %v2033
      %v2122 = vsel %vm2120, %v793, %v2035
      %v2123 = vsel %vm2120, %v794, %v2037
      %v2124 = vsel %vm2120, %v795, %v2039
      %v2125 = vsel %vm2120, %v796, %v2041
      %v2126 = vsel %vm2120, %v797, %v2043
      %v2127 = vsel %vm2120, %v798, %v2045
      %v2128 = vsel %vm2120, %v799, %v2047
      %vm2129 = vcmask 261120
      %v2130 = vsel %vm2129, %v2121, %v2065
      %v2131 = vsel %vm2129, %v2122, %v2067
      %v2132 = vsel %vm2129, %v2123, %v2069
      %v2133 = vsel %vm2129, %v2124, %v2071
      %v2134 = vsel %vm2129, %v2125, %v2073
      %v2135 = vsel %vm2129, %v2126, %v2075
      %v2136 = vsel %vm2129, %v2127, %v2077
      %v2137 = vsel %vm2129, %v2128, %v2079
      %vm2138 = vcmask 392192
      %v2139 = vsel %vm2138, %v2130, %v2097
      %v2140 = vsel %vm2138, %v2131, %v2099
      %v2141 = vsel %vm2138, %v2132, %v2101
      %v2142 = vsel %vm2138, %v2133, %v2103
      %v2143 = vsel %vm2138, %v2134, %v2105
      %v2144 = vsel %vm2138, %v2135, %v2107
      %v2145 = vsel %vm2138, %v2136, %v2109
      %v2146 = vsel %vm2138, %v2137, %v2111
      %vm2147 = vcmask 523264
      %2148 = vst.msk [vmem:[%s224] sm:$0xff] %vm2147, %v2139
      %2149 = vst.msk [vmem:[%s224 + $0x8] sm:$0xff] %vm2147, %v2140
      %2150 = vst.msk [vmem:[%s224 + $0x10] sm:$0xff] %vm2147, %v2141
      %2151 = vst.msk [vmem:[%s224 + $0x18] sm:$0xff] %vm2147, %v2142
      %2152 = vst.msk [vmem:[%s224 + $0x20] sm:$0xff] %vm2147, %v2143
      %2153 = vst.msk [vmem:[%s224 + $0x28] sm:$0xff] %vm2147, %v2144
      %2154 = vst.msk [vmem:[%s224 + $0x30] sm:$0xff] %vm2147, %v2145
      %2155 = vst.msk [vmem:[%s224 + $0x38] sm:$0xff] %vm2147, %v2146
      %s2156 = smul.u32 8, %s15
      %p2157 = scmp.lt.s32.totalorder %s2156, 31
      %s2158 = scalar_select %p2157, %s2156, 31
      %s2159 = smul.addr %s2158, 8
      %s2160 = scalar_lea.vmem %s4, %s2159
      // Predicated region
      $region37: #{encoder_forward.1} parent=35 // pred_check
        %p2161 = pneg %p127
      $region38: #{encoder_forward.1} parent=35 // pred_check_branch
        %2163 = sbr.rel (%p2161) target = $region40
      $region39: #{encoder_forward.1} parent=35 // pred_region
        %s2164 = smul.u32 8, %s15
      $region40: #{encoder_forward.1} parent=35 // pred_fallthru
        _
    $region36: #{encoder_forward.1} parent=5 // pred_fallthru
      _
    %p2165 = scmp.le.s32.totalorder 2, %s10
    // Predicated region
    $region41: #{encoder_forward.1} parent=5 // pred_check
      %p2166 = pneg %p2165
    $region42: #{encoder_forward.1} parent=5 // pred_check_branch
      %2168 = sbr.rel (%p2166) target = $region44
    $region43: #{encoder_forward.1} parent=5 // pred_region
      %s2169 = ssub.s32 %s10, 2
      // Predicated region
      $region45: #{encoder_forward.1} parent=43 // pred_check
        %p2170 = pneg %p133
      $region46: #{encoder_forward.1} parent=43 // pred_check_branch
        %2172 = sbr.rel (%p2170) target = $region48
      $region47: #{encoder_forward.1} parent=43 // pred_region
        %s2173 = smul.u32 8, %s16
        %p2174 = scmp.lt.s32.totalorder %s2173, 31
        %s2175 = scalar_select %p2174, %s2173, 31
        %s2176 = smul.addr %s2175, 8
        %s2177 = scalar_lea.vmem %s4, %s2176
      $region48: #{encoder_forward.1} parent=43 // pred_fallthru
        _
    $region44: #{encoder_forward.1} parent=5 // pred_fallthru
      _
  $region6: #{encoder_forward.1} parent=0 // loop_footer
    %s14 = sadd.s32 1, %s10
  $region7: #{encoder_forward.1} parent=0 // loop_footer_branch
    %9 = sbr.rel target = $region3
  $region8: #{encoder_forward.1} parent=0 // loop_exit
    _

</llo_original>
